<compile_context>
chip_gen: v5e
topology: v5e:2x2
jax: 0.10.0
libtpu: 0.0.40
codegen_flags: <defaults>
</compile_context>

<pallas_src>
import functools

import jax
import jax.numpy as jnp
from jax import lax
from jax.experimental import pallas as pl
from jax.experimental.pallas import tpu as pltpu


def _round_up(x, m):
    return (x + m - 1) // m * m


# ---------------------------------------------------------------------------
# Phase 1: per-image conv3x3(+bias) + merged 1x1 shortcut + partial BN stats
# ---------------------------------------------------------------------------
def _conv_stats_kernel(xpad_ref, w_ref, bias_ref, mask_ref, conv_ref, stats_ref,
                       *, mc, mc_alloc, wp_r, cout, nout):
    """xpad_ref : (1, (H+2)*Wp, Cin)  bf16  halo-padded image
       w_ref    : (9, Cin, Nout)      bf16  taps; centre tap cols [Cout:] = shortcut
       bias_ref : (1, Nout)           f32
       mask_ref : (Mc, 1)             f32   1.0 on valid (non-halo) rows
       conv_ref : (1, H*Wp, Nout)     f32   conv+bias (+shortcut cols), padded-row space
       stats_ref: (1, 2, Cout)        f32   [sum, sum_of_squares] over valid rows
    """
    # 9 shifted taps, static offsets, chained value accumulation (single store).
    acc = None
    for idx in range(9):
        kh, kw = divmod(idx, 3)
        start = kh * wp_r + kw                         # compile-time constant
        x_tap = xpad_ref[0, pl.ds(start, mc), :]       # [Mc, Cin] bf16
        part = jnp.dot(x_tap, w_ref[idx], preferred_element_type=jnp.float32)
        acc = part if acc is None else acc + part
    acc = acc + bias_ref[...]                          # [Mc, Nout] f32

    conv_ref[0, pl.ds(0, mc), :] = acc
    tail = mc_alloc - mc                               # pad rows (never read)
    if tail:
        conv_ref[0, pl.ds(mc, tail), :] = jnp.zeros((tail, nout), jnp.float32)

    # Masked partial statistics over valid rows only (halo rows zeroed once).
    cm = acc[:, 0:cout] * mask_ref[...]                # [Mc, Cout]
    stats_ref[0, 0:1, :] = jnp.sum(cm, axis=0, keepdims=True)
    stats_ref[0, 1:2, :] = jnp.sum(cm * cm, axis=0, keepdims=True)


# ---------------------------------------------------------------------------
# Phase 2: BN (with global stats) + shortcut add + ReLU, interior extraction
# ---------------------------------------------------------------------------
def _bn_add_relu_kernel(conv_ref, scale_ref, shift_ref, o_ref, *, w, cout):
    """conv_ref : (1, Wp, Nout) f32  one image-row worth of padded conv rows
       scale/shift: (1, Cout)   f32  gamma*rsqrt(var+eps), beta - mean*scale
       o_ref    : (1, 1, W, Cout) f32
    """
    conv = conv_ref[0, 0:w, 0:cout]                    # valid pixels of this row
    sc = conv_ref[0, 0:w, cout:2 * cout]               # merged shortcut columns
    y = conv * scale_ref[...] + shift_ref[...] + sc
    o_ref[0, 0, :, :] = jnp.maximum(y, 0.0)            # relu(relu(z)) == relu(z)


# ---------------------------------------------------------------------------
# One-time parameter prep: pre-transpose, merge shortcut (or identity), bf16
# ---------------------------------------------------------------------------
def prepare_resblock_params(params, in_channels, out_channels):
    # w1: [out, in, 3, 3] (OIHW) -> [9, in, out], tap index kh*3 + kw
    taps = jnp.transpose(params["w1"], (2, 3, 1, 0)).reshape(
        9, in_channels, out_channels)
    nout = 2 * out_channels
    w = jnp.zeros((9, in_channels, nout), jnp.float32)
    w = w.at[:, :, :out_channels].set(taps)
    if in_channels != out_channels:
        w_sc = jnp.transpose(params["ws"][:, :, 0, 0], (1, 0))
        b_sc = params["bs"]
    else:
        # Identity shortcut expressed as an identity 1x1 "conv" on the centre
        # tap's spare MXU columns (free on v6e/v7x; TODO(synk): skip on v5e).
        w_sc = jnp.eye(in_channels, dtype=jnp.float32)
        b_sc = jnp.zeros((out_channels,), jnp.float32)
    w = w.at[4, :, out_channels:].set(w_sc)
    bias = jnp.concatenate([params["b1"], b_sc])[None, :]
    return {
        "w": w.astype(jnp.bfloat16),
        "bias": bias.astype(jnp.float32),
        "gamma": params["gamma"][None, :].astype(jnp.float32),
        "beta": params["beta"][None, :].astype(jnp.float32),
    }


# ---------------------------------------------------------------------------
# Forward wrapper: 2 pallas_calls + tiny stats reduction
# ---------------------------------------------------------------------------
@jax.jit
def resblock_forward(x_nchw, w_taps, bias, gamma, beta):
    n, cin, h, w = x_nchw.shape
    nout = w_taps.shape[-1]
    cout = nout // 2
    wp_r = _round_up(w + 2, 8)          # halo-padded width, sublane aligned
    hp = h + 2
    rimg = hp * wp_r                    # padded rows per image
    mc = (h - 1) * wp_r + w             # conv rows actually computed per image
    mc_alloc = h * wp_r                 # allocated rows (Wp-aligned for phase 2)
    m_valid = n * h * w

    # Single producer: NCHW -> halo-padded NHWC rows, built directly in bf16.
    # (The NCHW<->NHWC transposes are required by the module's interface.)
    x_nhwc = jnp.transpose(x_nchw, (0, 2, 3, 1)).astype(jnp.bfloat16)
    xpad = jnp.zeros((n, hp, wp_r, cin), jnp.bfloat16)
    xpad = xpad.at[:, 1:h + 1, 1:w + 1, :].set(x_nhwc)
    xpad = xpad.reshape(n, rimg, cin)

    # Row-validity mask over the Mc computed rows (identical for every image).
    mask = ((jnp.arange(mc) % wp_r) < w).astype(jnp.float32)[:, None]

    conv_kernel = functools.partial(
        _conv_stats_kernel, mc=mc, mc_alloc=mc_alloc, wp_r=wp_r,
        cout=cout, nout=nout)

    p1_blocks = (rimg * cin * 2 + mc_alloc * nout * 4 + 2 * cout * 4)
    p1_vmem = 2 * p1_blocks + 9 * cin * nout * 2 + mc * 4 + nout * 4
    conv_hbm, stats = pl.pallas_call(
        conv_kernel,
        grid=(n,),
        in_specs=[
            pl.BlockSpec((1, rimg, cin), lambda i: (i, 0, 0)),
            pl.BlockSpec((9, cin, nout), lambda i: (0, 0, 0)),
            pl.BlockSpec((1, nout), lambda i: (0, 0)),
            pl.BlockSpec((mc, 1), lambda i: (0, 0)),
        ],
        out_specs=(
            pl.BlockSpec((1, mc_alloc, nout), lambda i: (i, 0, 0)),
            pl.BlockSpec((1, 2, cout), lambda i: (i, 0, 0)),
        ),
        out_shape=(
            jax.ShapeDtypeStruct((n, mc_alloc, nout), jnp.float32),
            jax.ShapeDtypeStruct((n, 2, cout), jnp.float32),
        ),
        compiler_params=pltpu.CompilerParams(
            dimension_semantics=("parallel",),
            vmem_limit_bytes=int(min(100 * 2**20,
                                     max(32 * 2**20, 2 * p1_vmem + (8 << 20)))),
        ),
        cost_estimate=pl.CostEstimate(
            flops=2 * n * mc * 9 * cin * nout,
            transcendentals=0,
            bytes_accessed=(n * rimg * cin * 2 + 9 * cin * nout * 2
                            + n * mc_alloc * nout * 4 + n * 2 * cout * 4),
        ),
    )(xpad, w_taps, bias, mask)

    # Global BatchNorm2d training statistics (biased variance, eps = 1e-5),
    # reduced exactly from the per-image f32 partial sums (tiny [N,2,C] array).
    ssum = jnp.sum(stats[:, 0, :], axis=0)
    ssq = jnp.sum(stats[:, 1, :], axis=0)
    mean = ssum / m_valid
    var = jnp.maximum(ssq / m_valid - mean * mean, 0.0)
    scale_v = gamma[0] * lax.rsqrt(var + 1e-5)
    shift_v = beta[0] - mean * scale_v
    scale = scale_v[None, :]
    shift = shift_v[None, :]

    bn_kernel = functools.partial(_bn_add_relu_kernel, w=w, cout=cout)
    p2_vmem = 2 * (wp_r * nout * 4 + w * cout * 4) + 4 * cout * 4
    y_nhwc = pl.pallas_call(
        bn_kernel,
        grid=(n, h),
        in_specs=[
            pl.BlockSpec((1, wp_r, nout), lambda i, j: (i, j, 0)),
            pl.BlockSpec((1, cout), lambda i, j: (0, 0)),
            pl.BlockSpec((1, cout), lambda i, j: (0, 0)),
        ],
        out_specs=pl.BlockSpec((1, 1, w, cout), lambda i, j: (i, j, 0, 0)),
        out_shape=jax.ShapeDtypeStruct((n, h, w, cout), jnp.float32),
        compiler_params=pltpu.CompilerParams(
            dimension_semantics=("parallel", "parallel"),
            vmem_limit_bytes=int(min(100 * 2**20,
                                     max(32 * 2**20, 2 * p2_vmem + (8 << 20)))),
        ),
        cost_estimate=pl.CostEstimate(
            flops=4 * n * h * w * cout,
            transcendentals=0,
            bytes_accessed=n * mc_alloc * nout * 4 + n * h * w * cout * 4,
        ),
    )(conv_hbm, scale, shift)

    # Back to PyTorch's NCHW layout.
    return jnp.transpose(y_nhwc, (0, 3, 1, 2))


# ---------------------------------------------------------------------------
# Pure-JAX reference (f32 everywhere; tolerance covers bf16 MXU inputs)
# ---------------------------------------------------------------------------
def resblock_reference(x, params, in_channels, out_channels):
    conv = lax.conv_general_dilated(
        x, params["w1"], window_strides=(1, 1), padding=((1, 1), (1, 1)),
        dimension_numbers=("NCHW", "OIHW", "NCHW"),
        precision=lax.Precision.HIGHEST)
    conv = conv + params["b1"][None, :, None, None]
    mean = jnp.mean(conv, axis=(0, 2, 3), keepdims=True)
    var = jnp.mean((conv - mean) ** 2, axis=(0, 2, 3), keepdims=True)
    bn = ((conv - mean) * lax.rsqrt(var + 1e-5)
          * params["gamma"][None, :, None, None]
          + params["beta"][None, :, None, None])
    if in_channels != out_channels:
        sc = lax.conv_general_dilated(
            x, params["ws"], window_strides=(1, 1), padding="VALID",
            dimension_numbers=("NCHW", "OIHW", "NCHW"),
            precision=lax.Precision.HIGHEST)
        sc = sc + params["bs"][None, :, None, None]
    else:
        sc = x
    return jnp.maximum(bn + sc, 0.0)


def init_params(key, in_channels, out_channels):
    ks = jax.random.split(key, 6)
    s = 0.05
    p = {
        "w1": s * jax.random.normal(ks[0], (out_channels, in_channels, 3, 3),
                                    jnp.float32),
        "b1": s * jax.random.normal(ks[1], (out_channels,), jnp.float32),
        "gamma": 1.0 + 0.1 * jax.random.normal(ks[2], (out_channels,),
                                               jnp.float32),
        "beta": 0.1 * jax.random.normal(ks[3], (out_channels,), jnp.float32),
    }
    if in_channels != out_channels:
        p["ws"] = s * jax.random.normal(ks[4], (out_channels, in_channels, 1, 1),
                                        jnp.float32)
        p["bs"] = s * jax.random.normal(ks[5], (out_channels,), jnp.float32)
    return p


if __name__ == "__main__":
    key = jax.random.PRNGKey(0)
    k_x, k_p, k_p2 = jax.random.split(key, 3)

    # ResBlockSimple(in_channels=64, out_channels=128), input 2 x 64 x 8 x 8.
    n, cin, cout, hw = 2, 64, 128, 8
    x = jax.random.normal(k_x, (n, cin, hw, hw), jnp.float32)
    params = init_params(k_p, cin, cout)
    prep = prepare_resblock_params(params, cin, cout)
    y = resblock_forward(x, prep["w"], prep["bias"], prep["gamma"], prep["beta"])
    jax.block_until_ready(y)
    assert y.shape == (n, cout, hw, hw)
    assert bool(jnp.all(jnp.isfinite(y)))
    ref = resblock_reference(x, params, cin, cout)
    err = float(jnp.max(jnp.abs(y - ref)))
    assert err < 0.1, f"conv-shortcut path mismatch: max abs err {err}"

    # Identity-shortcut configuration (in_channels == out_channels).
    params_id = init_params(k_p2, cout, cout)
    prep_id = prepare_resblock_params(params_id, cout, cout)
    x_id = jax.random.normal(k_x, (n, cout, hw, hw), jnp.float32)
    y_id = resblock_forward(x_id, prep_id["w"], prep_id["bias"],
                            prep_id["gamma"], prep_id["beta"])
    jax.block_until_ready(y_id)
    assert y_id.shape == (n, cout, hw, hw)
    ref_id = resblock_reference(x_id, params_id, cout, cout)
    err_id = float(jnp.max(jnp.abs(y_id - ref_id)))
    assert err_id < 0.1, f"identity path mismatch: max abs err {err_id}"

    print("KERNEL_OK")
</pallas_src>

<mosaic_0001>
module attributes {stable_mosaic.version = 11 : i64} {
  func.func @_conv_stats_kernel(%arg0: i32, %arg1: memref<1x160x64xbf16, #tpu.memory_space<vmem>>, %arg2: memref<9x64x256xbf16, #tpu.memory_space<vmem>>, %arg3: memref<1x256xf32, #tpu.memory_space<vmem>>, %arg4: memref<120x1xf32, #tpu.memory_space<vmem>>, %arg5: memref<1x128x256xf32, #tpu.memory_space<vmem>>, %arg6: memref<1x2x128xf32, #tpu.memory_space<vmem>>) attributes {dimension_semantics = [#tpu.dimension_semantics<parallel>], iteration_bounds = array<i64: 2>, scalar_prefetch = 0 : i64, scratch_operands = 0 : i64, tpu.core_type = #tpu.core_type<tc>, window_params = [{transform_indices = @transform_0, window_bounds = array<i64: 1, 160, 64>}, {pipeline_mode = #tpu.pipeline_mode<synchronous>, transform_indices = @transform_1, window_bounds = array<i64: 9, 64, 256>}, {pipeline_mode = #tpu.pipeline_mode<synchronous>, transform_indices = @transform_2, window_bounds = array<i64: 1, 256>}, {pipeline_mode = #tpu.pipeline_mode<synchronous>, transform_indices = @transform_3, window_bounds = array<i64: 120, 1>}, {transform_indices = @transform_4, window_bounds = array<i64: 1, 128, 256>}, {transform_indices = @transform_5, window_bounds = array<i64: 1, 2, 128>}]} {
    %c0 = arith.constant 0 : index
    %c0_0 = arith.constant 0 : index
    %c0_1 = arith.constant 0 : index
    %0 = vector.load %arg1[%c0, %c0_0, %c0_1] : memref<1x160x64xbf16, #tpu.memory_space<vmem>>, vector<1x120x64xbf16>
    %1 = vector.shape_cast %0 : vector<1x120x64xbf16> to vector<120x64xbf16>
    %c0_2 = arith.constant 0 : index
    %c0_3 = arith.constant 0 : index
    %c0_4 = arith.constant 0 : index
    %2 = vector.load %arg2[%c0_2, %c0_3, %c0_4] : memref<9x64x256xbf16, #tpu.memory_space<vmem>>, vector<1x64x256xbf16>
    %3 = vector.shape_cast %2 : vector<1x64x256xbf16> to vector<64x256xbf16>
    %cst = arith.constant dense<0.000000e+00> : vector<120x256xf32>
    %4 = tpu.matmul %1, %3, %cst {dimension_numbers = #tpu.dot_dimension_numbers<[1], [0], [0], [1], [0, 0, 1, 1], [], []>} : vector<120x64xbf16>, vector<64x256xbf16>, vector<120x256xf32> -> vector<120x256xf32>
    %c0_5 = arith.constant 0 : index
    %c1 = arith.constant 1 : index
    %c0_6 = arith.constant 0 : index
    %5 = vector.load %arg1[%c0_5, %c1, %c0_6] : memref<1x160x64xbf16, #tpu.memory_space<vmem>>, vector<1x120x64xbf16>
    %6 = vector.shape_cast %5 : vector<1x120x64xbf16> to vector<120x64xbf16>
    %c1_7 = arith.constant 1 : index
    %c0_8 = arith.constant 0 : index
    %c0_9 = arith.constant 0 : index
    %7 = vector.load %arg2[%c1_7, %c0_8, %c0_9] : memref<9x64x256xbf16, #tpu.memory_space<vmem>>, vector<1x64x256xbf16>
    %8 = vector.shape_cast %7 : vector<1x64x256xbf16> to vector<64x256xbf16>
    %cst_10 = arith.constant dense<0.000000e+00> : vector<120x256xf32>
    %9 = tpu.matmul %6, %8, %cst_10 {dimension_numbers = #tpu.dot_dimension_numbers<[1], [0], [0], [1], [0, 0, 1, 1], [], []>} : vector<120x64xbf16>, vector<64x256xbf16>, vector<120x256xf32> -> vector<120x256xf32>
    %10 = arith.addf %4, %9 : vector<120x256xf32>
    %c0_11 = arith.constant 0 : index
    %c2 = arith.constant 2 : index
    %c0_12 = arith.constant 0 : index
    %11 = vector.load %arg1[%c0_11, %c2, %c0_12] : memref<1x160x64xbf16, #tpu.memory_space<vmem>>, vector<1x120x64xbf16>
    %12 = vector.shape_cast %11 : vector<1x120x64xbf16> to vector<120x64xbf16>
    %c2_13 = arith.constant 2 : index
    %c0_14 = arith.constant 0 : index
    %c0_15 = arith.constant 0 : index
    %13 = vector.load %arg2[%c2_13, %c0_14, %c0_15] : memref<9x64x256xbf16, #tpu.memory_space<vmem>>, vector<1x64x256xbf16>
    %14 = vector.shape_cast %13 : vector<1x64x256xbf16> to vector<64x256xbf16>
    %cst_16 = arith.constant dense<0.000000e+00> : vector<120x256xf32>
    %15 = tpu.matmul %12, %14, %cst_16 {dimension_numbers = #tpu.dot_dimension_numbers<[1], [0], [0], [1], [0, 0, 1, 1], [], []>} : vector<120x64xbf16>, vector<64x256xbf16>, vector<120x256xf32> -> vector<120x256xf32>
    %16 = arith.addf %10, %15 : vector<120x256xf32>
    %c0_17 = arith.constant 0 : index
    %c16 = arith.constant 16 : index
    %c0_18 = arith.constant 0 : index
    %17 = vector.load %arg1[%c0_17, %c16, %c0_18] : memref<1x160x64xbf16, #tpu.memory_space<vmem>>, vector<1x120x64xbf16>
    %18 = vector.shape_cast %17 : vector<1x120x64xbf16> to vector<120x64xbf16>
    %c3 = arith.constant 3 : index
    %c0_19 = arith.constant 0 : index
    %c0_20 = arith.constant 0 : index
    %19 = vector.load %arg2[%c3, %c0_19, %c0_20] : memref<9x64x256xbf16, #tpu.memory_space<vmem>>, vector<1x64x256xbf16>
    %20 = vector.shape_cast %19 : vector<1x64x256xbf16> to vector<64x256xbf16>
    %cst_21 = arith.constant dense<0.000000e+00> : vector<120x256xf32>
    %21 = tpu.matmul %18, %20, %cst_21 {dimension_numbers = #tpu.dot_dimension_numbers<[1], [0], [0], [1], [0, 0, 1, 1], [], []>} : vector<120x64xbf16>, vector<64x256xbf16>, vector<120x256xf32> -> vector<120x256xf32>
    %22 = arith.addf %16, %21 : vector<120x256xf32>
    %c0_22 = arith.constant 0 : index
    %c17 = arith.constant 17 : index
    %c0_23 = arith.constant 0 : index
    %23 = vector.load %arg1[%c0_22, %c17, %c0_23] : memref<1x160x64xbf16, #tpu.memory_space<vmem>>, vector<1x120x64xbf16>
    %24 = vector.shape_cast %23 : vector<1x120x64xbf16> to vector<120x64xbf16>
    %c4 = arith.constant 4 : index
    %c0_24 = arith.constant 0 : index
    %c0_25 = arith.constant 0 : index
    %25 = vector.load %arg2[%c4, %c0_24, %c0_25] : memref<9x64x256xbf16, #tpu.memory_space<vmem>>, vector<1x64x256xbf16>
    %26 = vector.shape_cast %25 : vector<1x64x256xbf16> to vector<64x256xbf16>
    %cst_26 = arith.constant dense<0.000000e+00> : vector<120x256xf32>
    %27 = tpu.matmul %24, %26, %cst_26 {dimension_numbers = #tpu.dot_dimension_numbers<[1], [0], [0], [1], [0, 0, 1, 1], [], []>} : vector<120x64xbf16>, vector<64x256xbf16>, vector<120x256xf32> -> vector<120x256xf32>
    %28 = arith.addf %22, %27 : vector<120x256xf32>
    %c0_27 = arith.constant 0 : index
    %c18 = arith.constant 18 : index
    %c0_28 = arith.constant 0 : index
    %29 = vector.load %arg1[%c0_27, %c18, %c0_28] : memref<1x160x64xbf16, #tpu.memory_space<vmem>>, vector<1x120x64xbf16>
    %30 = vector.shape_cast %29 : vector<1x120x64xbf16> to vector<120x64xbf16>
    %c5 = arith.constant 5 : index
    %c0_29 = arith.constant 0 : index
    %c0_30 = arith.constant 0 : index
    %31 = vector.load %arg2[%c5, %c0_29, %c0_30] : memref<9x64x256xbf16, #tpu.memory_space<vmem>>, vector<1x64x256xbf16>
    %32 = vector.shape_cast %31 : vector<1x64x256xbf16> to vector<64x256xbf16>
    %cst_31 = arith.constant dense<0.000000e+00> : vector<120x256xf32>
    %33 = tpu.matmul %30, %32, %cst_31 {dimension_numbers = #tpu.dot_dimension_numbers<[1], [0], [0], [1], [0, 0, 1, 1], [], []>} : vector<120x64xbf16>, vector<64x256xbf16>, vector<120x256xf32> -> vector<120x256xf32>
    %34 = arith.addf %28, %33 : vector<120x256xf32>
    %c0_32 = arith.constant 0 : index
    %c32 = arith.constant 32 : index
    %c0_33 = arith.constant 0 : index
    %35 = vector.load %arg1[%c0_32, %c32, %c0_33] : memref<1x160x64xbf16, #tpu.memory_space<vmem>>, vector<1x120x64xbf16>
    %36 = vector.shape_cast %35 : vector<1x120x64xbf16> to vector<120x64xbf16>
    %c6 = arith.constant 6 : index
    %c0_34 = arith.constant 0 : index
    %c0_35 = arith.constant 0 : index
    %37 = vector.load %arg2[%c6, %c0_34, %c0_35] : memref<9x64x256xbf16, #tpu.memory_space<vmem>>, vector<1x64x256xbf16>
    %38 = vector.shape_cast %37 : vector<1x64x256xbf16> to vector<64x256xbf16>
    %cst_36 = arith.constant dense<0.000000e+00> : vector<120x256xf32>
    %39 = tpu.matmul %36, %38, %cst_36 {dimension_numbers = #tpu.dot_dimension_numbers<[1], [0], [0], [1], [0, 0, 1, 1], [], []>} : vector<120x64xbf16>, vector<64x256xbf16>, vector<120x256xf32> -> vector<120x256xf32>
    %40 = arith.addf %34, %39 : vector<120x256xf32>
    %c0_37 = arith.constant 0 : index
    %c33 = arith.constant 33 : index
    %c0_38 = arith.constant 0 : index
    %41 = vector.load %arg1[%c0_37, %c33, %c0_38] : memref<1x160x64xbf16, #tpu.memory_space<vmem>>, vector<1x120x64xbf16>
    %42 = vector.shape_cast %41 : vector<1x120x64xbf16> to vector<120x64xbf16>
    %c7 = arith.constant 7 : index
    %c0_39 = arith.constant 0 : index
    %c0_40 = arith.constant 0 : index
    %43 = vector.load %arg2[%c7, %c0_39, %c0_40] : memref<9x64x256xbf16, #tpu.memory_space<vmem>>, vector<1x64x256xbf16>
    %44 = vector.shape_cast %43 : vector<1x64x256xbf16> to vector<64x256xbf16>
    %cst_41 = arith.constant dense<0.000000e+00> : vector<120x256xf32>
    %45 = tpu.matmul %42, %44, %cst_41 {dimension_numbers = #tpu.dot_dimension_numbers<[1], [0], [0], [1], [0, 0, 1, 1], [], []>} : vector<120x64xbf16>, vector<64x256xbf16>, vector<120x256xf32> -> vector<120x256xf32>
    %46 = arith.addf %40, %45 : vector<120x256xf32>
    %c0_42 = arith.constant 0 : index
    %c34 = arith.constant 34 : index
    %c0_43 = arith.constant 0 : index
    %47 = vector.load %arg1[%c0_42, %c34, %c0_43] : memref<1x160x64xbf16, #tpu.memory_space<vmem>>, vector<1x120x64xbf16>
    %48 = vector.shape_cast %47 : vector<1x120x64xbf16> to vector<120x64xbf16>
    %c8 = arith.constant 8 : index
    %c0_44 = arith.constant 0 : index
    %c0_45 = arith.constant 0 : index
    %49 = vector.load %arg2[%c8, %c0_44, %c0_45] : memref<9x64x256xbf16, #tpu.memory_space<vmem>>, vector<1x64x256xbf16>
    %50 = vector.shape_cast %49 : vector<1x64x256xbf16> to vector<64x256xbf16>
    %cst_46 = arith.constant dense<0.000000e+00> : vector<120x256xf32>
    %51 = tpu.matmul %48, %50, %cst_46 {dimension_numbers = #tpu.dot_dimension_numbers<[1], [0], [0], [1], [0, 0, 1, 1], [], []>} : vector<120x64xbf16>, vector<64x256xbf16>, vector<120x256xf32> -> vector<120x256xf32>
    %52 = arith.addf %46, %51 : vector<120x256xf32>
    %c0_47 = arith.constant 0 : index
    %c0_48 = arith.constant 0 : index
    %53 = vector.load %arg3[%c0_47, %c0_48] : memref<1x256xf32, #tpu.memory_space<vmem>>, vector<1x256xf32>
    %54 = vector.broadcast %53 : vector<1x256xf32> to vector<120x256xf32>
    %55 = arith.addf %52, %54 : vector<120x256xf32>
    %c0_49 = arith.constant 0 : index
    %c0_50 = arith.constant 0 : index
    %c0_51 = arith.constant 0 : index
    %56 = vector.load %arg5[%c0_49, %c0_50, %c0_51] : memref<1x128x256xf32, #tpu.memory_space<vmem>>, vector<1x120x256xf32>
    %57 = vector.shape_cast %56 : vector<1x120x256xf32> to vector<120x256xf32>
    %58 = vector.shape_cast %55 : vector<120x256xf32> to vector<1x120x256xf32>
    tpu.vector_store %arg5[%c0_49, %c0_50, %c0_51], %58 {strides = array<i32>} : memref<1x128x256xf32, #tpu.memory_space<vmem>>, vector<1x120x256xf32>,
    %cst_52 = arith.constant 0.000000e+00 : f32
    %59 = vector.broadcast %cst_52 : f32 to vector<8x256xf32>
    %c0_53 = arith.constant 0 : index
    %c120 = arith.constant 120 : index
    %c0_54 = arith.constant 0 : index
    %60 = vector.load %arg5[%c0_53, %c120, %c0_54] : memref<1x128x256xf32, #tpu.memory_space<vmem>>, vector<1x8x256xf32>
    %61 = vector.shape_cast %60 : vector<1x8x256xf32> to vector<8x256xf32>
    %62 = vector.shape_cast %59 : vector<8x256xf32> to vector<1x8x256xf32>
    tpu.vector_store %arg5[%c0_53, %c120, %c0_54], %62 {strides = array<i32>} : memref<1x128x256xf32, #tpu.memory_space<vmem>>, vector<1x8x256xf32>,
    %63 = vector.extract_strided_slice %55 {offsets = [0, 0], sizes = [120, 128], strides = [1, 1]} : vector<120x256xf32> to vector<120x128xf32>
    %c0_55 = arith.constant 0 : index
    %c0_56 = arith.constant 0 : index
    %64 = vector.load %arg4[%c0_55, %c0_56] : memref<120x1xf32, #tpu.memory_space<vmem>>, vector<120x1xf32>
    %65 = vector.broadcast %64 : vector<120x1xf32> to vector<120x128xf32>
    %66 = arith.mulf %63, %65 : vector<120x128xf32>
    %cst_57 = arith.constant dense<0.000000e+00> : vector<128xf32>
    %67 = vector.multi_reduction <add>, %66, %cst_57 [0] : vector<120x128xf32> to vector<128xf32>
    %68 = vector.shape_cast %67 : vector<128xf32> to vector<1x128xf32>
    %c0_58 = arith.constant 0 : index
    %c0_59 = arith.constant 0 : index
    %c0_60 = arith.constant 0 : index
    %69 = vector.load %arg6[%c0_58, %c0_59, %c0_60] : memref<1x2x128xf32, #tpu.memory_space<vmem>>, vector<1x1x128xf32>
    %70 = vector.shape_cast %69 : vector<1x1x128xf32> to vector<1x128xf32>
    %71 = vector.shape_cast %68 : vector<1x128xf32> to vector<1x1x128xf32>
    tpu.vector_store %arg6[%c0_58, %c0_59, %c0_60], %71 {strides = array<i32>} : memref<1x2x128xf32, #tpu.memory_space<vmem>>, vector<1x1x128xf32>,
    %72 = arith.mulf %66, %66 : vector<120x128xf32>
    %cst_61 = arith.constant dense<0.000000e+00> : vector<128xf32>
    %73 = vector.multi_reduction <add>, %72, %cst_61 [0] : vector<120x128xf32> to vector<128xf32>
    %74 = vector.shape_cast %73 : vector<128xf32> to vector<1x128xf32>
    %c0_62 = arith.constant 0 : index
    %c1_63 = arith.constant 1 : index
    %c0_64 = arith.constant 0 : index
    %75 = vector.load %arg6[%c0_62, %c1_63, %c0_64] : memref<1x2x128xf32, #tpu.memory_space<vmem>>, vector<1x1x128xf32>
    %76 = vector.shape_cast %75 : vector<1x1x128xf32> to vector<1x128xf32>
    %77 = vector.shape_cast %74 : vector<1x128xf32> to vector<1x1x128xf32>
    tpu.vector_store %arg6[%c0_62, %c1_63, %c0_64], %77 {strides = array<i32>} : memref<1x2x128xf32, #tpu.memory_space<vmem>>, vector<1x1x128xf32>,
    return
  }
  func.func @transform_0(%arg0: i32) -> (i32, i32, i32) {
    %c0_i32 = arith.constant 0 : i32
    %c0_i32_0 = arith.constant 0 : i32
    %c0_i32_1 = arith.constant 0 : i32
    return %arg0, %c0_i32, %c0_i32_0 : i32, i32, i32
  }
  func.func @transform_1(%arg0: i32) -> (i32, i32, i32) {
    %c0_i32 = arith.constant 0 : i32
    %c0_i32_0 = arith.constant 0 : i32
    %c0_i32_1 = arith.constant 0 : i32
    %c0_i32_2 = arith.constant 0 : i32
    return %c0_i32, %c0_i32_0, %c0_i32_1 : i32, i32, i32
  }
  func.func @transform_2(%arg0: i32) -> (i32, i32) {
    %c0_i32 = arith.constant 0 : i32
    %c0_i32_0 = arith.constant 0 : i32
    %c0_i32_1 = arith.constant 0 : i32
    return %c0_i32, %c0_i32_0 : i32, i32
  }
  func.func @transform_3(%arg0: i32) -> (i32, i32) {
    %c0_i32 = arith.constant 0 : i32
    %c0_i32_0 = arith.constant 0 : i32
    %c0_i32_1 = arith.constant 0 : i32
    return %c0_i32, %c0_i32_0 : i32, i32
  }
  func.func @transform_4(%arg0: i32) -> (i32, i32, i32) {
    %c0_i32 = arith.constant 0 : i32
    %c0_i32_0 = arith.constant 0 : i32
    %c0_i32_1 = arith.constant 0 : i32
    return %arg0, %c0_i32, %c0_i32_0 : i32, i32, i32
  }
  func.func @transform_5(%arg0: i32) -> (i32, i32, i32) {
    %c0_i32 = arith.constant 0 : i32
    %c0_i32_0 = arith.constant 0 : i32
    %c0_i32_1 = arith.constant 0 : i32
    return %arg0, %c0_i32, %c0_i32_0 : i32, i32, i32
  }
}

module attributes {stable_mosaic.version = 11 : i64} {
  func.func @_bn_add_relu_kernel(%arg0: i32, %arg1: i32, %arg2: memref<1x16x256xf32, #tpu.memory_space<vmem>>, %arg3: memref<1x128xf32, #tpu.memory_space<vmem>>, %arg4: memref<1x128xf32, #tpu.memory_space<vmem>>, %arg5: memref<1x1x8x128xf32, #tpu.memory_space<vmem>>) attributes {dimension_semantics = [#tpu.dimension_semantics<parallel>, #tpu.dimension_semantics<parallel>], iteration_bounds = array<i64: 2, 8>, scalar_prefetch = 0 : i64, scratch_operands = 0 : i64, tpu.core_type = #tpu.core_type<tc>, window_params = [{transform_indices = @transform_0, window_bounds = array<i64: 1, 16, 256>}, {pipeline_mode = #tpu.pipeline_mode<synchronous>, transform_indices = @transform_1, window_bounds = array<i64: 1, 128>}, {pipeline_mode = #tpu.pipeline_mode<synchronous>, transform_indices = @transform_2, window_bounds = array<i64: 1, 128>}, {transform_indices = @transform_3, window_bounds = array<i64: 1, 1, 8, 128>}]} {
    %c0 = arith.constant 0 : index
    %c0_0 = arith.constant 0 : index
    %c0_1 = arith.constant 0 : index
    %0 = vector.load %arg2[%c0, %c0_0, %c0_1] : memref<1x16x256xf32, #tpu.memory_space<vmem>>, vector<1x8x128xf32>
    %1 = vector.shape_cast %0 : vector<1x8x128xf32> to vector<8x128xf32>
    %c0_2 = arith.constant 0 : index
    %c0_3 = arith.constant 0 : index
    %c128 = arith.constant 128 : index
    %2 = vector.load %arg2[%c0_2, %c0_3, %c128] : memref<1x16x256xf32, #tpu.memory_space<vmem>>, vector<1x8x128xf32>
    %3 = vector.shape_cast %2 : vector<1x8x128xf32> to vector<8x128xf32>
    %c0_4 = arith.constant 0 : index
    %c0_5 = arith.constant 0 : index
    %4 = vector.load %arg3[%c0_4, %c0_5] : memref<1x128xf32, #tpu.memory_space<vmem>>, vector<1x128xf32>
    %5 = vector.broadcast %4 : vector<1x128xf32> to vector<8x128xf32>
    %6 = arith.mulf %1, %5 : vector<8x128xf32>
    %c0_6 = arith.constant 0 : index
    %c0_7 = arith.constant 0 : index
    %7 = vector.load %arg4[%c0_6, %c0_7] : memref<1x128xf32, #tpu.memory_space<vmem>>, vector<1x128xf32>
    %8 = vector.broadcast %7 : vector<1x128xf32> to vector<8x128xf32>
    %9 = arith.addf %6, %8 : vector<8x128xf32>
    %10 = arith.addf %9, %3 : vector<8x128xf32>
    %cst = arith.constant 0.000000e+00 : f32
    %11 = vector.broadcast %cst : f32 to vector<8x128xf32>
    %12 = arith.maximumf %10, %11 : vector<8x128xf32>
    %c0_8 = arith.constant 0 : index
    %c0_9 = arith.constant 0 : index
    %c0_10 = arith.constant 0 : index
    %c0_11 = arith.constant 0 : index
    %13 = vector.load %arg5[%c0_8, %c0_9, %c0_10, %c0_11] : memref<1x1x8x128xf32, #tpu.memory_space<vmem>>, vector<1x1x8x128xf32>
    %14 = vector.shape_cast %13 : vector<1x1x8x128xf32> to vector<8x128xf32>
    %15 = vector.shape_cast %12 : vector<8x128xf32> to vector<1x1x8x128xf32>
    tpu.vector_store %arg5[%c0_8, %c0_9, %c0_10, %c0_11], %15 {strides = array<i32>} : memref<1x1x8x128xf32, #tpu.memory_space<vmem>>, vector<1x1x8x128xf32>,
    return
  }
  func.func @transform_0(%arg0: i32, %arg1: i32) -> (i32, i32, i32) {
    %c0_i32 = arith.constant 0 : i32
    %c0_i32_0 = arith.constant 0 : i32
    return %arg0, %arg1, %c0_i32 : i32, i32, i32
  }
  func.func @transform_1(%arg0: i32, %arg1: i32) -> (i32, i32) {
    %c0_i32 = arith.constant 0 : i32
    %c0_i32_0 = arith.constant 0 : i32
    %c0_i32_1 = arith.constant 0 : i32
    return %c0_i32, %c0_i32_0 : i32, i32
  }
  func.func @transform_2(%arg0: i32, %arg1: i32) -> (i32, i32) {
    %c0_i32 = arith.constant 0 : i32
    %c0_i32_0 = arith.constant 0 : i32
    %c0_i32_1 = arith.constant 0 : i32
    return %c0_i32, %c0_i32_0 : i32, i32
  }
  func.func @transform_3(%arg0: i32, %arg1: i32) -> (i32, i32, i32, i32) {
    %c0_i32 = arith.constant 0 : i32
    %c0_i32_0 = arith.constant 0 : i32
    %c0_i32_1 = arith.constant 0 : i32
    return %arg0, %arg1, %c0_i32, %c0_i32_0 : i32, i32, i32, i32
  }
}

</mosaic_0001>

<llo_original>
// kernel: resblock_forward.3
$region0: #{resblock_forward.3}
  #allocation0 [shape = 'u32[]', space=smem, size = 0x4, offset = 0x4, fixed_abs, tag = 'smem constant byte address 0x4 - core index']
  #allocation1 [shape = 'u32[72,128]{1,0:T(1,128)}', space=vmem, size = 0x9000, scoped, tag = 'internal scratch']
  %s0 = inlined_call_operand.vmem [shape: f32[2,128,256], index: 0, kind: input, shape index: {}]
  %s1 = inlined_call_operand.vmem [shape: f32[1,128], index: 1, kind: input, shape index: {}]
  %s2 = inlined_call_operand.vmem [shape: f32[1,128], index: 2, kind: input, shape index: {}]
  %s3 = inlined_call_operand.hbm [shape: f32[2,8,8,128], index: 3, kind: output, shape index: {}]
  %s4 = sld [smem:[#allocation0]]
  $region45: #{resblock_forward.3} parent=0
    _
  %s6 = ssub.s32 1, %s4
  %s7 = scalar_select 0, %s6, %s4
  $region1: #{resblock_forward.3} parent=0
    #allocation2 [shape = 'u8[8192]{0}', space=vmem, size = 0x2000, scoped, tag = 'output window, operand 0']
    #allocation3 [shape = 's32[2]{0}', space=sflag, size = 0x8, scoped, tag = 'scoped memory for resblock_forward.3']
    %8 = vsyncpa [#allocation3], 0
    %s9 = scalar_lea.sflag [#allocation3], 1
    %10 = vsyncpa %s9, 0
    loop: start=0, step=1, limit=18
    $region2: #{resblock_forward.3} parent=1 // loop_pre_header
      _
    $region3: #{resblock_forward.3} parent=1 // loop_header
      %s12 = sphi 0, %s16
      %p13 = scmp.ge.s32.totalorder %s12, 18
      %s19 = sphi 0, %s31
      %s20 = sphi 0, %s27
      %s21 = sphi 0, %s19
      %s22 = sphi 0, %s20
      %s23 = sphi 0, %s21
      %s24 = sphi 0, %s22
      %s36 = sphi 0, %s38
      %s39 = sphi 0, %s36
      %s40 = sphi 0, %s39
      %s56 = sphi 0, %s40
      %s60 = sphi 0, %s60
      %s62 = sphi 0, %s60
      %s63 = sphi 0, %s62
      %s77 = sphi 0, %s63
      %s81 = sphi 0, %s81
      %s83 = sphi 0, %s81
      %s84 = sphi 0, %s83
      %s98 = sphi 0, %s84
      %s106 = sphi 0, %s108
      %s109 = sphi 0, %s106
      %s110 = sphi 0, %s109
      %s126 = sphi 0, %s110
    $region4: #{resblock_forward.3} parent=1 // loop_header_branch
      %15 = sbr.rel (%p13) target = $region8
    $region5: #{resblock_forward.3} parent=1 // loop_body
      %s17 = ssub.s32 %s12, 1
      %s18 = ssub.s32 %s12, 2
      %s25 = sadd.s32 1, %s20
      %p26 = scmp.ge.s32.totalorder %s25, 8
      %s27 = scalar_select %p26, 0, %s25
      %s28 = sadd.s32 1, %s19
      %s29 = scalar_select %p26, %s28, %s19
      %p30 = scmp.ge.s32.totalorder %s29, 2
      %s31 = scalar_select %p30, 0, %s29
      %s32 = ssub.s32 %s19, %s31
      %s33 = ssub.s32 %s20, %s27
      %s34 = sor.u32 %s32, %s33
      %p35 = scmp.eq.s32.totalorder %s34, 0
      %s37 = sadd.s32 %s36, 1
      %s38 = scalar_select %p35, %s36, %s37
      %p41 = pneg %p35
      %p42 = scmp.eq.s32.totalorder %s12, 15
      %p43 = por %p41, %p42
      %p44 = scmp.ne.s32.totalorder %s36, %s39
      %p45 = scmp.eq.s32.totalorder %s12, 0
      %p46 = por %p44, %p45
      %p47 = scmp.ne.s32.totalorder %s36, %s39
      %p48 = scmp.eq.s32.totalorder %s17, 15
      %p49 = por %p47, %p48
      %p50 = scmp.ne.s32.totalorder %s39, %s40
      %p51 = scmp.eq.s32.totalorder %s17, 0
      %p52 = por %p50, %p51
      %p53 = scmp.ne.s32.totalorder %s39, %s40
      %p54 = scmp.eq.s32.totalorder %s18, 15
      %p55 = por %p53, %p54
      %p57 = scmp.ne.s32.totalorder %s40, %s56
      %p58 = scmp.eq.s32.totalorder %s18, 0
      %p59 = por %p57, %p58
      %s61 = sadd.s32 %s60, 1
      %p64 = scmp.eq.s32.totalorder %s12, 15
      %p65 = scmp.ne.s32.totalorder %s60, %s62
      %p66 = scmp.eq.s32.totalorder %s12, 0
      %p67 = por %p65, %p66
      %p68 = scmp.ne.s32.totalorder %s60, %s62
      %p69 = scmp.eq.s32.totalorder %s17, 15
      %p70 = por %p68, %p69
      %p71 = scmp.ne.s32.totalorder %s62, %s63
      %p72 = scmp.eq.s32.totalorder %s17, 0
      %p73 = por %p71, %p72
      %p74 = scmp.ne.s32.totalorder %s62, %s63
      %p75 = scmp.eq.s32.totalorder %s18, 15
      %p76 = por %p74, %p75
      %p78 = scmp.ne.s32.totalorder %s63, %s77
      %p79 = scmp.eq.s32.totalorder %s18, 0
      %p80 = por %p78, %p79
      %s82 = sadd.s32 %s81, 1
      %p85 = scmp.eq.s32.totalorder %s12, 15
      %p86 = scmp.ne.s32.totalorder %s81, %s83
      %p87 = scmp.eq.s32.totalorder %s12, 0
      %p88 = por %p86, %p87
      %p89 = scmp.ne.s32.totalorder %s81, %s83
      %p90 = scmp.eq.s32.totalorder %s17, 15
      %p91 = por %p89, %p90
      %p92 = scmp.ne.s32.totalorder %s83, %s84
      %p93 = scmp.eq.s32.totalorder %s17, 0
      %p94 = por %p92, %p93
      %p95 = scmp.ne.s32.totalorder %s83, %s84
      %p96 = scmp.eq.s32.totalorder %s18, 15
      %p97 = por %p95, %p96
      %p99 = scmp.ne.s32.totalorder %s84, %s98
      %p100 = scmp.eq.s32.totalorder %s18, 0
      %p101 = por %p99, %p100
      %s102 = ssub.s32 %s19, %s31
      %s103 = ssub.s32 %s20, %s27
      %s104 = sor.u32 %s102, %s103
      %p105 = scmp.eq.s32.totalorder %s104, 0
      %s107 = sadd.s32 %s106, 1
      %s108 = scalar_select %p105, %s106, %s107
      %p111 = pneg %p105
      %p112 = scmp.eq.s32.totalorder %s12, 15
      %p113 = por %p111, %p112
      %p114 = scmp.ne.s32.totalorder %s106, %s109
      %p115 = scmp.eq.s32.totalorder %s12, 0
      %p116 = por %p114, %p115
      %p117 = scmp.ne.s32.totalorder %s106, %s109
      %p118 = scmp.eq.s32.totalorder %s17, 15
      %p119 = por %p117, %p118
      %p120 = scmp.ne.s32.totalorder %s109, %s110
      %p121 = scmp.eq.s32.totalorder %s17, 0
      %p122 = por %p120, %p121
      %p123 = scmp.ne.s32.totalorder %s109, %s110
      %p124 = scmp.eq.s32.totalorder %s18, 15
      %p125 = por %p123, %p124
      %p127 = scmp.ne.s32.totalorder %s110, %s126
      %p128 = scmp.eq.s32.totalorder %s18, 0
      %p129 = por %p127, %p128
      %p130 = scmp.le.s32.totalorder 1, %s12
      %p131 = scmp.lt.s32.totalorder %s12, 17
      %p132 = pnand %p130, %p131
      %p133 = pneg %p132
      // Predicated region
      $region9: #{resblock_forward.3} parent=5 // pred_check
        _
      $region10: #{resblock_forward.3} parent=5 // pred_check_branch
        %135 = sbr.rel (%p132) target = $region12
      $region11: #{resblock_forward.3} parent=5 // pred_region
        %s136 = ssub.s32 %s12, 1
        // Predicated region
        $region13: #{resblock_forward.3} parent=11 // pred_check
          %p137 = pneg %p73
        $region14: #{resblock_forward.3} parent=11 // pred_check_branch
          %139 = sbr.rel (%p137) target = $region16
        $region15: #{resblock_forward.3} parent=11 // pred_region
          _
        $region16: #{resblock_forward.3} parent=11 // pred_fallthru
          _
        // Predicated region
        $region17: #{resblock_forward.3} parent=11 // pred_check
          %p140 = pneg %p94
        $region18: #{resblock_forward.3} parent=11 // pred_check_branch
          %142 = sbr.rel (%p140) target = $region20
        $region19: #{resblock_forward.3} parent=11 // pred_region
          _
        $region20: #{resblock_forward.3} parent=11 // pred_fallthru
          _
      $region12: #{resblock_forward.3} parent=5 // pred_fallthru
        _
      %p143 = scmp.lt.s32.totalorder %s12, 16
      // Predicated region
      $region21: #{resblock_forward.3} parent=5 // pred_check
        %p144 = pneg %p143
      $region22: #{resblock_forward.3} parent=5 // pred_check_branch
        %146 = sbr.rel (%p144) target = $region24
      $region23: #{resblock_forward.3} parent=5 // pred_region
        // Predicated region
        $region25: #{resblock_forward.3} parent=23 // pred_check
          %p147 = pneg %p46
        $region26: #{resblock_forward.3} parent=23 // pred_check_branch
          %149 = sbr.rel (%p147) target = $region28
        $region27: #{resblock_forward.3} parent=23 // pred_region
          %s150 = smul.u32 2, %s20
          %p151 = scmp.lt.s32.totalorder %s19, 1
          %s152 = scalar_select %p151, %s19, 1
          %p153 = scmp.lt.s32.totalorder %s150, 15
          %s154 = scalar_select %p153, %s150, 15
          %s155 = smul.addr %s154, 2
          %s156 = smul.addr %s152, 32
          %s157 = sadd.s32 %s155, %s156
          %s158 = smul.addr %s157, 8
          %s159 = scalar_lea.vmem %s0, %s158
          %s160 = smul.u32 2, %s20
        $region28: #{resblock_forward.3} parent=23 // pred_fallthru
          _
      $region24: #{resblock_forward.3} parent=5 // pred_fallthru
        _
      %p161 = scmp.le.s32.totalorder 1, %s12
      %p162 = scmp.lt.s32.totalorder %s12, 17
      %p163 = pnand %p161, %p162
      %p164 = pneg %p163
      // Predicated region
      $region29: #{resblock_forward.3} parent=5 // pred_check
        _
      $region30: #{resblock_forward.3} parent=5 // pred_check_branch
        %166 = sbr.rel (%p163) target = $region32
      $region31: #{resblock_forward.3} parent=5 // pred_region
        %s167 = ssub.s32 %s12, 1
        %s168 = smul.u32 2, %s22
        %p169 = scmp.lt.s32.totalorder %s21, 1
        %s170 = scalar_select %p169, %s21, 1
        %p171 = scmp.lt.s32.totalorder %s168, 15
        %s172 = scalar_select %p171, %s168, 15
        %s173 = smul.addr %s172, 2
        %s174 = smul.addr %s170, 32
        %s175 = sadd.s32 %s173, %s174
        %s176 = smul.addr %s175, 8
        %s177 = scalar_lea.vmem %s0, %s176
        %p178 = pneg %p52
        %p179 = pneg %p49
        %p180 = pneg %p73
        %p181 = pneg %p70
        %p182 = pneg %p94
        %p183 = pneg %p91
        %p184 = pneg %p122
        %p185 = pneg %p119
        %s186 = sand.u32 %s109, 1
        %s187 = scalar_lea.sflag [#allocation3], %s186
        %s188 = sand.u32 %s109, 1
        %s189 = smul.addr %s188, 8
        %s190 = scalar_lea.vmem [#allocation2], %s189
        %s191 = smul.u32 2, %s22
        %p192 = scmp.lt.s32.totalorder %s21, 1
        %s193 = scalar_select %p192, %s21, 1
        %p194 = scmp.lt.s32.totalorder %s191, 15
        %s195 = scalar_select %p194, %s191, 15
        %s196 = smul.addr %s195, 2
        %s197 = smul.addr %s193, 32
        %s198 = sadd.s32 %s196, %s197
        %s199 = smul.addr %s198, 8
        %s200 = scalar_lea.vmem %s0, %s199
        %s201 = smul.u32 2, %s22
        %v202 = vld [vmem:[%s200] sm:$0xff]
        %v203 = vld [vmem:[%s200 + $0x8] sm:$0xff]
        %v204 = vld [vmem:[%s1] sm:$0x1]
        %v206 = vperm.slane %v204, 0
        %v208 = vmul.f32 %v202, %v206
        %v209 = vld [vmem:[%s2] sm:$0x1]
        %v211 = vperm.slane %v209, 0
        %v213 = vadd.f32 %v208, %v211
        %v214 = vadd.f32 %v213, %v203
        %v215 = vmax.f32 %v214, 0.0
        %216 = vst [vmem:[%s190] sm:$0xff] %v215
        %s217 = sand.u32 %s109, 1
        %s218 = scalar_lea.sflag [#allocation3], %s217
        %s219 = sand.u32 %s109, 1
        %s220 = smul.addr %s219, 8
        %s221 = scalar_lea.vmem [#allocation2], %s220
        // Predicated region
        $region33: #{resblock_forward.3} parent=31 // pred_check
          %p222 = pneg %p119
        $region34: #{resblock_forward.3} parent=31 // pred_check_branch
          %224 = sbr.rel (%p222) target = $region36
        $region35: #{resblock_forward.3} parent=31 // pred_region
          %226 = vsyncadd %s218, 0
          %s227 = smul.addr %s21, 8
          %s228 = sadd.s32 %s22, %s227
          %s229 = smul.addr %s228, 8
          %s230 = scalar_lea.hbm %s3, %s229
          %s232 = sshll.u32 %s221, 4
          %s233 = int_to_ptr.vmem [resolvable:$true] %s232
          %s234 = sshll.u32 %s230, 4
          %s235 = int_to_ptr.hbm [resolvable:$true] %s234
          %237 = dma.vmem_to_hbm [thread:$0]  %s233, 128, %s235, %s218
        $region36: #{resblock_forward.3} parent=31 // pred_fallthru
          _
      $region32: #{resblock_forward.3} parent=5 // pred_fallthru
        _
      %p238 = scmp.le.s32.totalorder 2, %s12
      // Predicated region
      $region37: #{resblock_forward.3} parent=5 // pred_check
        %p239 = pneg %p238
      $region38: #{resblock_forward.3} parent=5 // pred_check_branch
        %241 = sbr.rel (%p239) target = $region40
      $region39: #{resblock_forward.3} parent=5 // pred_region
        %s242 = ssub.s32 %s12, 2
        // Predicated region
        $region41: #{resblock_forward.3} parent=39 // pred_check
          %p243 = pneg %p125
        $region42: #{resblock_forward.3} parent=39 // pred_check_branch
          %245 = sbr.rel (%p243) target = $region44
        $region43: #{resblock_forward.3} parent=39 // pred_region
          %s246 = sand.u32 %s110, 1
          %s247 = scalar_lea.sflag [#allocation3], %s246
          %s248 = sand.u32 %s110, 1
          %s249 = smul.addr %s248, 8
          %s250 = scalar_lea.vmem [#allocation2], %s249
          %252 = dma.done %s247, 128
        $region44: #{resblock_forward.3} parent=39 // pred_fallthru
          _
      $region40: #{resblock_forward.3} parent=5 // pred_fallthru
        _
    $region6: #{resblock_forward.3} parent=1 // loop_footer
      %s16 = sadd.s32 1, %s12
    $region7: #{resblock_forward.3} parent=1 // loop_footer_branch
      %11 = sbr.rel target = $region3
    $region8: #{resblock_forward.3} parent=1 // loop_exit
      _
    %253 = vsyncpa [#allocation3], 1
    %s254 = scalar_lea.sflag [#allocation3], 1
    %255 = vsyncpa %s254, 1

// kernel: resblock_forward.2
$region0: #{resblock_forward.2}
  #allocation0 [shape = 'u32[]', space=smem, size = 0x4, offset = 0x4, fixed_abs, tag = 'smem constant byte address 0x4 - core index']
  #allocation1 [shape = 'u32[72,128]{1,0:T(1,128)}', space=vmem, size = 0x9000, scoped, tag = 'internal scratch']
  %s0 = inlined_call_operand.vmem [shape: bf16[2,160,64], index: 0, kind: input, shape index: {}]
  %s1 = inlined_call_operand.hbm [shape: bf16[9,64,256], index: 1, kind: input, shape index: {}]
  %s2 = inlined_call_operand.vmem [shape: f32[1,256], index: 2, kind: input, shape index: {}]
  %s3 = inlined_call_operand.vmem [shape: f32[120,1], index: 3, kind: input, shape index: {}]
  %s4 = inlined_call_operand.vmem [shape: f32[2,128,256], index: 4, kind: output, shape index: {0}]
  %s5 = inlined_call_operand.vmem [shape: f32[2,2,128], index: 5, kind: output, shape index: {1}]
  %6 = xla_tuple %s4, %s5
  %s7 = sld [smem:[#allocation0]]
  $region61: #{resblock_forward.2} parent=0
    _
  %s9 = ssub.s32 1, %s7
  %s10 = scalar_select 0, %s9, %s7
  $region1: #{resblock_forward.2} parent=0
    #allocation2 [shape = 'u8[294912]{0}', space=vmem, size = 0x48000, scoped, tag = 'input window, operand 1, single buffered']
    #allocation3 [shape = 's32[2]{0}', space=sflag, size = 0x8, scoped, tag = 'scoped memory for resblock_forward.2']
    %11 = vsyncpa [#allocation3], 0
    loop: start=0, step=1, limit=4
    $region2: #{resblock_forward.2} parent=1 // loop_pre_header
      _
    $region3: #{resblock_forward.2} parent=1 // loop_header
      %s13 = sphi 0, %s17
      %p14 = scmp.ge.s32.totalorder %s13, 4
      %s23 = sphi 0, %s25
      %s26 = sphi 0, %s23
      %s27 = sphi 0, %s26
      %s43 = sphi 0, %s27
      %s47 = sphi 0, %s47
      %s49 = sphi 0, %s47
      %s50 = sphi 0, %s49
      %s64 = sphi 0, %s50
      %s68 = sphi 0, %s68
      %s70 = sphi 0, %s68
      %s71 = sphi 0, %s70
      %s85 = sphi 0, %s71
      %s89 = sphi 0, %s89
      %s91 = sphi 0, %s89
      %s92 = sphi 0, %s91
      %s106 = sphi 0, %s92
      %s112 = sphi 0, %s114
      %s115 = sphi 0, %s112
      %s116 = sphi 0, %s115
      %s132 = sphi 0, %s116
      %s138 = sphi 0, %s140
      %s141 = sphi 0, %s138
      %s142 = sphi 0, %s141
      %s158 = sphi 0, %s142
    $region4: #{resblock_forward.2} parent=1 // loop_header_branch
      %16 = sbr.rel (%p14) target = $region8
    $region5: #{resblock_forward.2} parent=1 // loop_body
      %s18 = ssub.s32 %s13, 1
      %s19 = ssub.s32 %s13, 2
      %s20 = sadd.s32 %s13, 1
      %s21 = ssub.s32 %s13, %s20
      %p22 = scmp.eq.s32.totalorder %s21, 0
      %s24 = sadd.s32 %s23, 1
      %s25 = scalar_select %p22, %s23, %s24
      %p28 = pneg %p22
      %p29 = scmp.eq.s32.totalorder %s13, 1
      %p30 = por %p28, %p29
      %p31 = scmp.ne.s32.totalorder %s23, %s26
      %p32 = scmp.eq.s32.totalorder %s13, 0
      %p33 = por %p31, %p32
      %p34 = scmp.ne.s32.totalorder %s23, %s26
      %p35 = scmp.eq.s32.totalorder %s18, 1
      %p36 = por %p34, %p35
      %p37 = scmp.ne.s32.totalorder %s26, %s27
      %p38 = scmp.eq.s32.totalorder %s18, 0
      %p39 = por %p37, %p38
      %p40 = scmp.ne.s32.totalorder %s26, %s27
      %p41 = scmp.eq.s32.totalorder %s19, 1
      %p42 = por %p40, %p41
      %p44 = scmp.ne.s32.totalorder %s27, %s43
      %p45 = scmp.eq.s32.totalorder %s19, 0
      %p46 = por %p44, %p45
      %s48 = sadd.s32 %s47, 1
      %p51 = scmp.eq.s32.totalorder %s13, 1
      %p52 = scmp.ne.s32.totalorder %s47, %s49
      %p53 = scmp.eq.s32.totalorder %s13, 0
      %p54 = por %p52, %p53
      %p55 = scmp.ne.s32.totalorder %s47, %s49
      %p56 = scmp.eq.s32.totalorder %s18, 1
      %p57 = por %p55, %p56
      %p58 = scmp.ne.s32.totalorder %s49, %s50
      %p59 = scmp.eq.s32.totalorder %s18, 0
      %p60 = por %p58, %p59
      %p61 = scmp.ne.s32.totalorder %s49, %s50
      %p62 = scmp.eq.s32.totalorder %s19, 1
      %p63 = por %p61, %p62
      %p65 = scmp.ne.s32.totalorder %s50, %s64
      %p66 = scmp.eq.s32.totalorder %s19, 0
      %p67 = por %p65, %p66
      %s69 = sadd.s32 %s68, 1
      %p72 = scmp.eq.s32.totalorder %s13, 1
      %p73 = scmp.ne.s32.totalorder %s68, %s70
      %p74 = scmp.eq.s32.totalorder %s13, 0
      %p75 = por %p73, %p74
      %p76 = scmp.ne.s32.totalorder %s68, %s70
      %p77 = scmp.eq.s32.totalorder %s18, 1
      %p78 = por %p76, %p77
      %p79 = scmp.ne.s32.totalorder %s70, %s71
      %p80 = scmp.eq.s32.totalorder %s18, 0
      %p81 = por %p79, %p80
      %p82 = scmp.ne.s32.totalorder %s70, %s71
      %p83 = scmp.eq.s32.totalorder %s19, 1
      %p84 = por %p82, %p83
      %p86 = scmp.ne.s32.totalorder %s71, %s85
      %p87 = scmp.eq.s32.totalorder %s19, 0
      %p88 = por %p86, %p87
      %s90 = sadd.s32 %s89, 1
      %p93 = scmp.eq.s32.totalorder %s13, 1
      %p94 = scmp.ne.s32.totalorder %s89, %s91
      %p95 = scmp.eq.s32.totalorder %s13, 0
      %p96 = por %p94, %p95
      %p97 = scmp.ne.s32.totalorder %s89, %s91
      %p98 = scmp.eq.s32.totalorder %s18, 1
      %p99 = por %p97, %p98
      %p100 = scmp.ne.s32.totalorder %s91, %s92
      %p101 = scmp.eq.s32.totalorder %s18, 0
      %p102 = por %p100, %p101
      %p103 = scmp.ne.s32.totalorder %s91, %s92
      %p104 = scmp.eq.s32.totalorder %s19, 1
      %p105 = por %p103, %p104
      %p107 = scmp.ne.s32.totalorder %s92, %s106
      %p108 = scmp.eq.s32.totalorder %s19, 0
      %p109 = por %p107, %p108
      %s110 = ssub.s32 %s13, %s20
      %p111 = scmp.eq.s32.totalorder %s110, 0
      %s113 = sadd.s32 %s112, 1
      %s114 = scalar_select %p111, %s112, %s113
      %p117 = pneg %p111
      %p118 = scmp.eq.s32.totalorder %s13, 1
      %p119 = por %p117, %p118
      %p120 = scmp.ne.s32.totalorder %s112, %s115
      %p121 = scmp.eq.s32.totalorder %s13, 0
      %p122 = por %p120, %p121
      %p123 = scmp.ne.s32.totalorder %s112, %s115
      %p124 = scmp.eq.s32.totalorder %s18, 1
      %p125 = por %p123, %p124
      %p126 = scmp.ne.s32.totalorder %s115, %s116
      %p127 = scmp.eq.s32.totalorder %s18, 0
      %p128 = por %p126, %p127
      %p129 = scmp.ne.s32.totalorder %s115, %s116
      %p130 = scmp.eq.s32.totalorder %s19, 1
      %p131 = por %p129, %p130
      %p133 = scmp.ne.s32.totalorder %s116, %s132
      %p134 = scmp.eq.s32.totalorder %s19, 0
      %p135 = por %p133, %p134
      %s136 = ssub.s32 %s13, %s20
      %p137 = scmp.eq.s32.totalorder %s136, 0
      %s139 = sadd.s32 %s138, 1
      %s140 = scalar_select %p137, %s138, %s139
      %p143 = pneg %p137
      %p144 = scmp.eq.s32.totalorder %s13, 1
      %p145 = por %p143, %p144
      %p146 = scmp.ne.s32.totalorder %s138, %s141
      %p147 = scmp.eq.s32.totalorder %s13, 0
      %p148 = por %p146, %p147
      %p149 = scmp.ne.s32.totalorder %s138, %s141
      %p150 = scmp.eq.s32.totalorder %s18, 1
      %p151 = por %p149, %p150
      %p152 = scmp.ne.s32.totalorder %s141, %s142
      %p153 = scmp.eq.s32.totalorder %s18, 0
      %p154 = por %p152, %p153
      %p155 = scmp.ne.s32.totalorder %s141, %s142
      %p156 = scmp.eq.s32.totalorder %s19, 1
      %p157 = por %p155, %p156
      %p159 = scmp.ne.s32.totalorder %s142, %s158
      %p160 = scmp.eq.s32.totalorder %s19, 0
      %p161 = por %p159, %p160
      %p162 = scmp.le.s32.totalorder 1, %s13
      %p163 = scmp.lt.s32.totalorder %s13, 3
      %p164 = pnand %p162, %p163
      %p165 = pneg %p164
      // Predicated region
      $region9: #{resblock_forward.2} parent=5 // pred_check
        _
      $region10: #{resblock_forward.2} parent=5 // pred_check_branch
        %167 = sbr.rel (%p164) target = $region12
      $region11: #{resblock_forward.2} parent=5 // pred_region
        %s168 = ssub.s32 %s13, 1
        // Predicated region
        $region13: #{resblock_forward.2} parent=11 // pred_check
          %p169 = pneg %p60
        $region14: #{resblock_forward.2} parent=11 // pred_check_branch
          %171 = sbr.rel (%p169) target = $region16
        $region15: #{resblock_forward.2} parent=11 // pred_region
          %173 = vsyncadd [#allocation3], 0
          %s174 = sshll.u32 %s1, 4
          %s175 = int_to_ptr.hbm [resolvable:$true] %s174
          %s176 = sshll.u32 [#allocation2], 4
          %s177 = int_to_ptr.vmem [resolvable:$true] %s176
          %182 = dma.hbm_to_vmem [thread:$0]  %s175, 9216, %s177, [#allocation3], 128, 128, 8
        $region16: #{resblock_forward.2} parent=11 // pred_fallthru
          _
        // Predicated region
        $region17: #{resblock_forward.2} parent=11 // pred_check
          %p183 = pneg %p81
        $region18: #{resblock_forward.2} parent=11 // pred_check_branch
          %185 = sbr.rel (%p183) target = $region20
        $region19: #{resblock_forward.2} parent=11 // pred_region
          _
        $region20: #{resblock_forward.2} parent=11 // pred_fallthru
          _
        // Predicated region
        $region21: #{resblock_forward.2} parent=11 // pred_check
          %p186 = pneg %p102
        $region22: #{resblock_forward.2} parent=11 // pred_check_branch
          %188 = sbr.rel (%p186) target = $region24
        $region23: #{resblock_forward.2} parent=11 // pred_region
          _
        $region24: #{resblock_forward.2} parent=11 // pred_fallthru
          _
      $region12: #{resblock_forward.2} parent=5 // pred_fallthru
        _
      %p189 = scmp.lt.s32.totalorder %s13, 2
      // Predicated region
      $region25: #{resblock_forward.2} parent=5 // pred_check
        %p190 = pneg %p189
      $region26: #{resblock_forward.2} parent=5 // pred_check_branch
        %192 = sbr.rel (%p190) target = $region28
      $region27: #{resblock_forward.2} parent=5 // pred_region
        // Predicated region
        $region29: #{resblock_forward.2} parent=27 // pred_check
          %p193 = pneg %p33
        $region30: #{resblock_forward.2} parent=27 // pred_check_branch
          %195 = sbr.rel (%p193) target = $region32
        $region31: #{resblock_forward.2} parent=27 // pred_region
          %p196 = scmp.lt.s32.totalorder %s13, 1
          %s197 = scalar_select %p196, %s13, 1
          %s198 = smul.addr %s197, 20
          %s199 = smul.addr %s198, 4
          %s200 = scalar_lea.vmem %s0, %s199
        $region32: #{resblock_forward.2} parent=27 // pred_fallthru
          _
      $region28: #{resblock_forward.2} parent=5 // pred_fallthru
        _
      %p201 = scmp.le.s32.totalorder 1, %s13
      %p202 = scmp.lt.s32.totalorder %s13, 3
      %p203 = pnand %p201, %p202
      %p204 = pneg %p203
      // Predicated region
      $region33: #{resblock_forward.2} parent=5 // pred_check
        _
      $region34: #{resblock_forward.2} parent=5 // pred_check_branch
        %206 = sbr.rel (%p203) target = $region36
      $region35: #{resblock_forward.2} parent=5 // pred_region
        %s207 = ssub.s32 %s13, 1
        // Predicated region
        $region37: #{resblock_forward.2} parent=35 // pred_check
          %p208 = pneg %p60
        $region38: #{resblock_forward.2} parent=35 // pred_check_branch
          %210 = sbr.rel (%p208) target = $region40
        $region39: #{resblock_forward.2} parent=35 // pred_region
          %212 = dma.done [#allocation3], 9216
        $region40: #{resblock_forward.2} parent=35 // pred_fallthru
          _
        %p213 = scmp.lt.s32.totalorder %s18, 1
        %s214 = scalar_select %p213, %s18, 1
        %s215 = smul.addr %s214, 20
        %s216 = smul.addr %s215, 4
        %s217 = scalar_lea.vmem %s0, %s216
        %p218 = pneg %p39
        %p219 = pneg %p36
        %p220 = pneg %p60
        %p221 = pneg %p57
        %p222 = pneg %p81
        %p223 = pneg %p78
        %p224 = pneg %p102
        %p225 = pneg %p99
        %p226 = pneg %p128
        %p227 = pneg %p125
        %p228 = scmp.lt.s32.totalorder %s18, 1
        %s229 = scalar_select %p228, %s18, 1
        %s230 = smul.addr %s229, 32
        %s231 = smul.addr %s230, 8
        %s232 = scalar_lea.vmem %s4, %s231
        %p233 = pneg %p154
        %p234 = pneg %p151
        %p235 = scmp.lt.s32.totalorder %s18, 1
        %s236 = scalar_select %p235, %s18, 1
        %s237 = smul.addr %s236, 2
        %s238 = scalar_lea.vmem %s5, %s237
        %p239 = scmp.lt.s32.totalorder %s18, 1
        %s240 = scalar_select %p239, %s18, 1
        %s241 = smul.addr %s240, 20
        %s242 = smul.addr %s241, 4
        %s243 = scalar_lea.vmem %s0, %s242
        %p244 = scmp.lt.s32.totalorder %s18, 1
        %s245 = scalar_select %p244, %s18, 1
        %s246 = smul.addr %s245, 32
        %s247 = smul.addr %s246, 8
        %s248 = scalar_lea.vmem %s4, %s247
        %p249 = scmp.lt.s32.totalorder %s18, 1
        %s250 = scalar_select %p249, %s18, 1
        %s251 = smul.addr %s250, 2
        %s252 = scalar_lea.vmem %s5, %s251
        %v254 = vld [vmem:[%s243] sm:$0xf]
        %v255 = vld [vmem:[%s243 + $0x4] sm:$0xf]
        %v256 = vld [vmem:[%s243 + $0x8] sm:$0xf]
        %v257 = vld [vmem:[%s243 + $0xc] sm:$0xf]
        %v258 = vld [vmem:[%s243 + $0x10] sm:$0xf]
        %v259 = vld [vmem:[%s243 + $0x14] sm:$0xf]
        %v260 = vld [vmem:[%s243 + $0x18] sm:$0xf]
        %v261 = vld [vmem:[%s243 + $0x1c] sm:$0xf]
        %v262 = vld [vmem:[%s243 + $0x20] sm:$0xf]
        %v263 = vld [vmem:[%s243 + $0x24] sm:$0xf]
        %v264 = vld [vmem:[%s243 + $0x28] sm:$0xf]
        %v265 = vld [vmem:[%s243 + $0x2c] sm:$0xf]
        %v266 = vld [vmem:[%s243 + $0x30] sm:$0xf]
        %v267 = vld [vmem:[%s243 + $0x34] sm:$0xf]
        %v268 = vld [vmem:[%s243 + $0x38] sm:$0xf]
        %v269 = vld [vmem:[#allocation2] sm:$0xff]
        %v270 = vld [vmem:[#allocation2 + $0x8] sm:$0xff]
        %v271 = vld [vmem:[#allocation2 + $0x10] sm:$0xff]
        %v272 = vld [vmem:[#allocation2 + $0x18] sm:$0xff]
        %v273 = vld [vmem:[#allocation2 + $0x20] sm:$0xff]
        %v274 = vld [vmem:[#allocation2 + $0x28] sm:$0xff]
        %v275 = vld [vmem:[#allocation2 + $0x30] sm:$0xff]
        %v276 = vld [vmem:[#allocation2 + $0x38] sm:$0xff]
        %v277 = vld [vmem:[%s243 + $0x3c] sm:$0x1]
        %s278 = scalar_lea.vmem [#allocation2], 64
        %v279 = vld [vmem:[%s278] sm:$0xff]
        %v280 = vld [vmem:[%s278 + $0x8] sm:$0xff]
        %v281 = vld [vmem:[%s278 + $0x10] sm:$0xff]
        %v282 = vld [vmem:[%s278 + $0x18] sm:$0xff]
        %v283 = vld [vmem:[%s278 + $0x20] sm:$0xff]
        %v284 = vld [vmem:[%s278 + $0x28] sm:$0xff]
        %v285 = vld [vmem:[%s278 + $0x30] sm:$0xff]
        %v286 = vld [vmem:[%s278 + $0x38] sm:$0xff]
        %v303 = vunpack.c.l.b16 %v254
        %v304 = vunpack.c.l.b16 %v255
        %v305 = vunpack.c.l.b16 %v256
        %v306 = vunpack.c.l.b16 %v257
        %v307 = vunpack.c.l.b16 %v258
        %v308 = vunpack.c.l.b16 %v259
        %v309 = vunpack.c.l.b16 %v260
        %v310 = vunpack.c.l.b16 %v261
        %v311 = vunpack.c.l.b16 %v262
        %v312 = vunpack.c.l.b16 %v263
        %v313 = vunpack.c.l.b16 %v264
        %v314 = vunpack.c.l.b16 %v265
        %v315 = vunpack.c.l.b16 %v266
        %v316 = vunpack.c.l.b16 %v267
        %v317 = vunpack.c.l.b16 %v268
        %v318 = vunpack.c.l.b16 %v277
        %v319 = vpack.c.b16 %v304, %v303
        %v320 = vpack.c.b16 %v306, %v305
        %v321 = vpack.c.b16 %v308, %v307
        %v322 = vpack.c.b16 %v310, %v309
        %v323 = vpack.c.b16 %v312, %v311
        %v324 = vpack.c.b16 %v314, %v313
        %v325 = vpack.c.b16 %v316, %v315
        %v326 = vpack.c.b16 %v318, %v317
        %vm327 = vsmask.f32 7424
        %v329 = vshrl.u32 %v319, 16
        %v331 = vshll.u32 %v319, 16
        %v333 = vrot.slane %v331, 1
        %v334 = vor.u32 %v329, %v333
        %v336 = vshll.u32 %v320, 16
        %v338 = vrot.slane %v336, 1
        %v339 = vsel %vm327, %v334, %v338
        %v340 = vshrl.u32 %v320, 16
        %v342 = vor.u32 %v340, %v338
        %v344 = vshll.u32 %v321, 16
        %v346 = vrot.slane %v344, 1
        %v347 = vsel %vm327, %v342, %v346
        %v348 = vshrl.u32 %v321, 16
        %v350 = vor.u32 %v348, %v346
        %v352 = vshll.u32 %v322, 16
        %v354 = vrot.slane %v352, 1
        %v355 = vsel %vm327, %v350, %v354
        %v356 = vshrl.u32 %v322, 16
        %v358 = vor.u32 %v356, %v354
        %v360 = vshll.u32 %v323, 16
        %v362 = vrot.slane %v360, 1
        %v363 = vsel %vm327, %v358, %v362
        %v364 = vshrl.u32 %v323, 16
        %v366 = vor.u32 %v364, %v362
        %v368 = vshll.u32 %v324, 16
        %v370 = vrot.slane %v368, 1
        %v371 = vsel %vm327, %v366, %v370
        %v372 = vshrl.u32 %v324, 16
        %v374 = vor.u32 %v372, %v370
        %v376 = vshll.u32 %v325, 16
        %v378 = vrot.slane %v376, 1
        %v379 = vsel %vm327, %v374, %v378
        %v380 = vshrl.u32 %v325, 16
        %v382 = vor.u32 %v380, %v378
        %v384 = vshll.u32 %v326, 16
        %v386 = vrot.slane %v384, 1
        %v387 = vsel %vm327, %v382, %v386
        %v388 = vshrl.u32 %v326, 16
        %v390 = vor.u32 %v388, %v386
        %v399 = vunpack.c.l.b16 %v279
        %v400 = vunpack.c.h.b16 %v279
        %v401 = vunpack.c.l.b16 %v280
        %v402 = vunpack.c.h.b16 %v280
        %v403 = vunpack.c.l.b16 %v281
        %v404 = vunpack.c.h.b16 %v281
        %v405 = vunpack.c.l.b16 %v282
        %v406 = vunpack.c.h.b16 %v282
        %v407 = vunpack.c.l.b16 %v283
        %v408 = vunpack.c.h.b16 %v283
        %v409 = vunpack.c.l.b16 %v284
        %v410 = vunpack.c.h.b16 %v284
        %v411 = vunpack.c.l.b16 %v285
        %v412 = vunpack.c.h.b16 %v285
        %v413 = vunpack.c.l.b16 %v286
        %v414 = vunpack.c.h.b16 %v286
        %v415 = vpack.c.b16 %v401, %v399
        %v416 = vpack.c.b16 %v402, %v400
        %v417 = vpack.c.b16 %v405, %v403
        %v418 = vpack.c.b16 %v406, %v404
        %v419 = vpack.c.b16 %v409, %v407
        %v420 = vpack.c.b16 %v410, %v408
        %v421 = vpack.c.b16 %v413, %v411
        %v422 = vpack.c.b16 %v414, %v412
        %vm431 = vcmask 523264
        %v433 = vsel %vm431, %v339, 0
        %v436 = vsel %vm431, %v347, 0
        %v439 = vsel %vm431, %v355, 0
        %v442 = vsel %vm431, %v363, 0
        %v445 = vsel %vm431, %v371, 0
        %v448 = vsel %vm431, %v379, 0
        %v451 = vsel %vm431, %v387, 0
        %v454 = vsel %vm431, %v390, 0
        %456 = vmatpush.bf16.msra.mxu0 0
        %457 = vmatpush.bf16.msra.mxu0 0
        %458 = vmatpush.bf16.msra.mxu0 0
        %459 = vmatpush.bf16.msra.mxu0 0
        %460 = vmatpush.bf16.msra.mxu0 %v421
        %461 = vmatpush.bf16.msra.mxu0 %v419
        %462 = vmatpush.bf16.msra.mxu0 %v417
        %463 = vmatpush.bf16.msra.mxu0 %v415
        %464 = vmatmul.bf16.gmra.mxu0 %v433
        %v465 = vpop.f32.mrf.mxu0
        %v466 = vadd.f32 0.0, %v465
        %v467 = vpop.f32.mrf.mxu0
        %v468 = vadd.f32 0.0, %v467
        %469 = vmatmul.bf16.gmra.mxu0 %v436
        %v470 = vpop.f32.mrf.mxu0
        %v471 = vadd.f32 0.0, %v470
        %v472 = vpop.f32.mrf.mxu0
        %v473 = vadd.f32 0.0, %v472
        %474 = vmatmul.bf16.gmra.mxu0 %v439
        %v475 = vpop.f32.mrf.mxu0
        %v476 = vadd.f32 0.0, %v475
        %v477 = vpop.f32.mrf.mxu0
        %v478 = vadd.f32 0.0, %v477
        %479 = vmatmul.bf16.gmra.mxu0 %v442
        %v480 = vpop.f32.mrf.mxu0
        %v481 = vadd.f32 0.0, %v480
        %v482 = vpop.f32.mrf.mxu0
        %v483 = vadd.f32 0.0, %v482
        %484 = vmatmul.bf16.gmra.mxu0 %v445
        %v485 = vpop.f32.mrf.mxu0
        %v486 = vadd.f32 0.0, %v485
        %v487 = vpop.f32.mrf.mxu0
        %v488 = vadd.f32 0.0, %v487
        %489 = vmatmul.bf16.gmra.mxu0 %v448
        %v490 = vpop.f32.mrf.mxu0
        %v491 = vadd.f32 0.0, %v490
        %v492 = vpop.f32.mrf.mxu0
        %v493 = vadd.f32 0.0, %v492
        %494 = vmatmul.bf16.gmra.mxu0 %v451
        %v495 = vpop.f32.mrf.mxu0
        %v496 = vadd.f32 0.0, %v495
        %v497 = vpop.f32.mrf.mxu0
        %v498 = vadd.f32 0.0, %v497
        %499 = vmatmul.bf16.gmra.mxu0 %v454
        %v500 = vpop.f32.mrf.mxu0
        %v501 = vadd.f32 0.0, %v500
        %v502 = vpop.f32.mrf.mxu0
        %503 = vdwg.mxu0
        %504 = vmatpush.bf16.msra.mxu0 0
        %505 = vmatpush.bf16.msra.mxu0 0
        %506 = vmatpush.bf16.msra.mxu0 0
        %507 = vmatpush.bf16.msra.mxu0 0
        %508 = vmatpush.bf16.msra.mxu0 %v422
        %509 = vmatpush.bf16.msra.mxu0 %v420
        %510 = vmatpush.bf16.msra.mxu0 %v418
        %511 = vmatpush.bf16.msra.mxu0 %v416
        %512 = vmatmul.bf16.gmra.mxu0 %v433
        %v513 = vpop.f32.mrf.mxu0
        %v514 = vadd.f32 0.0, %v513
        %v515 = vpop.f32.mrf.mxu0
        %v516 = vadd.f32 0.0, %v515
        %517 = vmatmul.bf16.gmra.mxu0 %v436
        %v518 = vpop.f32.mrf.mxu0
        %v519 = vadd.f32 0.0, %v518
        %v520 = vpop.f32.mrf.mxu0
        %v521 = vadd.f32 0.0, %v520
        %522 = vmatmul.bf16.gmra.mxu0 %v439
        %v523 = vpop.f32.mrf.mxu0
        %v524 = vadd.f32 0.0, %v523
        %v525 = vpop.f32.mrf.mxu0
        %v526 = vadd.f32 0.0, %v525
        %527 = vmatmul.bf16.gmra.mxu0 %v442
        %v528 = vpop.f32.mrf.mxu0
        %v529 = vadd.f32 0.0, %v528
        %v530 = vpop.f32.mrf.mxu0
        %v531 = vadd.f32 0.0, %v530
        %532 = vmatmul.bf16.gmra.mxu0 %v445
        %v533 = vpop.f32.mrf.mxu0
        %v534 = vadd.f32 0.0, %v533
        %v535 = vpop.f32.mrf.mxu0
        %v536 = vadd.f32 0.0, %v535
        %537 = vmatmul.bf16.gmra.mxu0 %v448
        %v538 = vpop.f32.mrf.mxu0
        %v539 = vadd.f32 0.0, %v538
        %v540 = vpop.f32.mrf.mxu0
        %v541 = vadd.f32 0.0, %v540
        %542 = vmatmul.bf16.gmra.mxu0 %v451
        %v543 = vpop.f32.mrf.mxu0
        %v544 = vadd.f32 0.0, %v543
        %v545 = vpop.f32.mrf.mxu0
        %v546 = vadd.f32 0.0, %v545
        %547 = vmatmul.bf16.gmra.mxu0 %v454
        %v548 = vpop.f32.mrf.mxu0
        %v549 = vadd.f32 0.0, %v548
        %v550 = vpop.f32.mrf.mxu0
        %551 = vdwg.mxu0
        %v552 = vpack.c.b16 %v317, %v317
        %v561 = vunpack.c.l.b16 %v269
        %v562 = vunpack.c.h.b16 %v269
        %v563 = vunpack.c.l.b16 %v270
        %v564 = vunpack.c.h.b16 %v270
        %v565 = vunpack.c.l.b16 %v271
        %v566 = vunpack.c.h.b16 %v271
        %v567 = vunpack.c.l.b16 %v272
        %v568 = vunpack.c.h.b16 %v272
        %v569 = vunpack.c.l.b16 %v273
        %v570 = vunpack.c.h.b16 %v273
        %v571 = vunpack.c.l.b16 %v274
        %v572 = vunpack.c.h.b16 %v274
        %v573 = vunpack.c.l.b16 %v275
        %v574 = vunpack.c.h.b16 %v275
        %v575 = vunpack.c.l.b16 %v276
        %v576 = vunpack.c.h.b16 %v276
        %v577 = vpack.c.b16 %v563, %v561
        %v578 = vpack.c.b16 %v564, %v562
        %v579 = vpack.c.b16 %v567, %v565
        %v580 = vpack.c.b16 %v568, %v566
        %v581 = vpack.c.b16 %v571, %v569
        %v582 = vpack.c.b16 %v572, %v570
        %v583 = vpack.c.b16 %v575, %v573
        %v584 = vpack.c.b16 %v576, %v574
        %v593 = vsel %vm431, %v319, 0
        %v595 = vsel %vm431, %v320, 0
        %v597 = vsel %vm431, %v321, 0
        %v599 = vsel %vm431, %v322, 0
        %v601 = vsel %vm431, %v323, 0
        %v603 = vsel %vm431, %v324, 0
        %v605 = vsel %vm431, %v325, 0
        %v608 = vsel %vm431, %v552, 0
        %610 = vmatpush.bf16.msra.mxu0 0
        %611 = vmatpush.bf16.msra.mxu0 0
        %612 = vmatpush.bf16.msra.mxu0 0
        %613 = vmatpush.bf16.msra.mxu0 0
        %614 = vmatpush.bf16.msra.mxu0 %v583
        %615 = vmatpush.bf16.msra.mxu0 %v581
        %616 = vmatpush.bf16.msra.mxu0 %v579
        %617 = vmatpush.bf16.msra.mxu0 %v577
        %618 = vmatmul.bf16.gmra.mxu0 %v593
        %v619 = vpop.f32.mrf.mxu0
        %v620 = vadd.f32 %v466, %v619
        %v621 = vpop.f32.mrf.mxu0
        %v622 = vadd.f32 %v468, %v621
        %623 = vmatmul.bf16.gmra.mxu0 %v595
        %v624 = vpop.f32.mrf.mxu0
        %v625 = vadd.f32 %v471, %v624
        %v626 = vpop.f32.mrf.mxu0
        %v627 = vadd.f32 %v473, %v626
        %628 = vmatmul.bf16.gmra.mxu0 %v597
        %v629 = vpop.f32.mrf.mxu0
        %v630 = vadd.f32 %v476, %v629
        %v631 = vpop.f32.mrf.mxu0
        %v632 = vadd.f32 %v478, %v631
        %633 = vmatmul.bf16.gmra.mxu0 %v599
        %v634 = vpop.f32.mrf.mxu0
        %v635 = vadd.f32 %v481, %v634
        %v636 = vpop.f32.mrf.mxu0
        %v637 = vadd.f32 %v483, %v636
        %638 = vmatmul.bf16.gmra.mxu0 %v601
        %v639 = vpop.f32.mrf.mxu0
        %v640 = vadd.f32 %v486, %v639
        %v641 = vpop.f32.mrf.mxu0
        %v642 = vadd.f32 %v488, %v641
        %643 = vmatmul.bf16.gmra.mxu0 %v603
        %v644 = vpop.f32.mrf.mxu0
        %v645 = vadd.f32 %v491, %v644
        %v646 = vpop.f32.mrf.mxu0
        %v647 = vadd.f32 %v493, %v646
        %648 = vmatmul.bf16.gmra.mxu0 %v605
        %v649 = vpop.f32.mrf.mxu0
        %v650 = vadd.f32 %v496, %v649
        %v651 = vpop.f32.mrf.mxu0
        %v652 = vadd.f32 %v498, %v651
        %653 = vmatmul.bf16.gmra.mxu0 %v608
        %v654 = vpop.f32.mrf.mxu0
        %v655 = vadd.f32 %v501, %v654
        %v656 = vpop.f32.mrf.mxu0
        %657 = vdwg.mxu0
        %658 = vmatpush.bf16.msra.mxu0 0
        %659 = vmatpush.bf16.msra.mxu0 0
        %660 = vmatpush.bf16.msra.mxu0 0
        %661 = vmatpush.bf16.msra.mxu0 0
        %662 = vmatpush.bf16.msra.mxu0 %v584
        %663 = vmatpush.bf16.msra.mxu0 %v582
        %664 = vmatpush.bf16.msra.mxu0 %v580
        %665 = vmatpush.bf16.msra.mxu0 %v578
        %666 = vmatmul.bf16.gmra.mxu0 %v593
        %v667 = vpop.f32.mrf.mxu0
        %v668 = vadd.f32 %v514, %v667
        %v669 = vpop.f32.mrf.mxu0
        %v670 = vadd.f32 %v516, %v669
        %671 = vmatmul.bf16.gmra.mxu0 %v595
        %v672 = vpop.f32.mrf.mxu0
        %v673 = vadd.f32 %v519, %v672
        %v674 = vpop.f32.mrf.mxu0
        %v675 = vadd.f32 %v521, %v674
        %676 = vmatmul.bf16.gmra.mxu0 %v597
        %v677 = vpop.f32.mrf.mxu0
        %v678 = vadd.f32 %v524, %v677
        %v679 = vpop.f32.mrf.mxu0
        %v680 = vadd.f32 %v526, %v679
        %681 = vmatmul.bf16.gmra.mxu0 %v599
        %v682 = vpop.f32.mrf.mxu0
        %v683 = vadd.f32 %v529, %v682
        %v684 = vpop.f32.mrf.mxu0
        %v685 = vadd.f32 %v531, %v684
        %686 = vmatmul.bf16.gmra.mxu0 %v601
        %v687 = vpop.f32.mrf.mxu0
        %v688 = vadd.f32 %v534, %v687
        %v689 = vpop.f32.mrf.mxu0
        %v690 = vadd.f32 %v536, %v689
        %691 = vmatmul.bf16.gmra.mxu0 %v603
        %v692 = vpop.f32.mrf.mxu0
        %v693 = vadd.f32 %v539, %v692
        %v694 = vpop.f32.mrf.mxu0
        %v695 = vadd.f32 %v541, %v694
        %696 = vmatmul.bf16.gmra.mxu0 %v605
        %v697 = vpop.f32.mrf.mxu0
        %v698 = vadd.f32 %v544, %v697
        %v699 = vpop.f32.mrf.mxu0
        %v700 = vadd.f32 %v546, %v699
        %701 = vmatmul.bf16.gmra.mxu0 %v608
        %v702 = vpop.f32.mrf.mxu0
        %v703 = vadd.f32 %v549, %v702
        %v704 = vpop.f32.mrf.mxu0
        %705 = vdwg.mxu0
        %v706 = vld [vmem:[%s243] sm:$0xe]
        %s707 = scalar_lea.vmem [#allocation2], 128
        %v708 = vld [vmem:[%s707] sm:$0xff]
        %v709 = vld [vmem:[%s707 + $0x8] sm:$0xff]
        %v710 = vld [vmem:[%s707 + $0x10] sm:$0xff]
        %v711 = vld [vmem:[%s707 + $0x18] sm:$0xff]
        %v712 = vld [vmem:[%s707 + $0x20] sm:$0xff]
        %v713 = vld [vmem:[%s707 + $0x28] sm:$0xff]
        %v714 = vld [vmem:[%s707 + $0x30] sm:$0xff]
        %v715 = vld [vmem:[%s707 + $0x38] sm:$0xff]
        %v717 = vunpack.c.l.b16 %v706
        %v718 = vpack.c.b16 %v304, %v717
        %vm719 = vcmask 1046528
        %v720 = vrot.slane %v718, 1
        %v721 = vrot.slane %v320, 1
        %v722 = vsel %vm719, %v720, %v721
        %v723 = vrot.slane %v321, 1
        %v724 = vsel %vm719, %v721, %v723
        %v725 = vrot.slane %v322, 1
        %v726 = vsel %vm719, %v723, %v725
        %v727 = vrot.slane %v323, 1
        %v728 = vsel %vm719, %v725, %v727
        %v729 = vrot.slane %v324, 1
        %v730 = vsel %vm719, %v727, %v729
        %v731 = vrot.slane %v325, 1
        %v732 = vsel %vm719, %v729, %v731
        %v733 = vrot.slane %v326, 1
        %v734 = vsel %vm719, %v731, %v733
        %v743 = vunpack.c.l.b16 %v708
        %v744 = vunpack.c.h.b16 %v708
        %v745 = vunpack.c.l.b16 %v709
        %v746 = vunpack.c.h.b16 %v709
        %v747 = vunpack.c.l.b16 %v710
        %v748 = vunpack.c.h.b16 %v710
        %v749 = vunpack.c.l.b16 %v711
        %v750 = vunpack.c.h.b16 %v711
        %v751 = vunpack.c.l.b16 %v712
        %v752 = vunpack.c.h.b16 %v712
        %v753 = vunpack.c.l.b16 %v713
        %v754 = vunpack.c.h.b16 %v713
        %v755 = vunpack.c.l.b16 %v714
        %v756 = vunpack.c.h.b16 %v714
        %v757 = vunpack.c.l.b16 %v715
        %v758 = vunpack.c.h.b16 %v715
        %v759 = vpack.c.b16 %v745, %v743
        %v760 = vpack.c.b16 %v746, %v744
        %v761 = vpack.c.b16 %v749, %v747
        %v762 = vpack.c.b16 %v750, %v748
        %v763 = vpack.c.b16 %v753, %v751
        %v764 = vpack.c.b16 %v754, %v752
        %v765 = vpack.c.b16 %v757, %v755
        %v766 = vpack.c.b16 %v758, %v756
        %v776 = vsel %vm431, %v722, 0
        %v779 = vsel %vm431, %v724, 0
        %v782 = vsel %vm431, %v726, 0
        %v785 = vsel %vm431, %v728, 0
        %v788 = vsel %vm431, %v730, 0
        %v791 = vsel %vm431, %v732, 0
        %v794 = vsel %vm431, %v734, 0
        %v797 = vsel %vm431, %v733, 0
        %799 = vmatpush.bf16.msra.mxu0 0
        %800 = vmatpush.bf16.msra.mxu0 0
        %801 = vmatpush.bf16.msra.mxu0 0
        %802 = vmatpush.bf16.msra.mxu0 0
        %803 = vmatpush.bf16.msra.mxu0 %v765
        %804 = vmatpush.bf16.msra.mxu0 %v763
        %805 = vmatpush.bf16.msra.mxu0 %v761
        %806 = vmatpush.bf16.msra.mxu0 %v759
        %807 = vmatmul.bf16.gmra.mxu0 %v776
        %v808 = vpop.f32.mrf.mxu0
        %v809 = vadd.f32 0.0, %v808
        %v810 = vpop.f32.mrf.mxu0
        %v811 = vadd.f32 0.0, %v810
        %812 = vmatmul.bf16.gmra.mxu0 %v779
        %v813 = vpop.f32.mrf.mxu0
        %v814 = vadd.f32 0.0, %v813
        %v815 = vpop.f32.mrf.mxu0
        %v816 = vadd.f32 0.0, %v815
        %817 = vmatmul.bf16.gmra.mxu0 %v782
        %v818 = vpop.f32.mrf.mxu0
        %v819 = vadd.f32 0.0, %v818
        %v820 = vpop.f32.mrf.mxu0
        %v821 = vadd.f32 0.0, %v820
        %822 = vmatmul.bf16.gmra.mxu0 %v785
        %v823 = vpop.f32.mrf.mxu0
        %v824 = vadd.f32 0.0, %v823
        %v825 = vpop.f32.mrf.mxu0
        %v826 = vadd.f32 0.0, %v825
        %827 = vmatmul.bf16.gmra.mxu0 %v788
        %v828 = vpop.f32.mrf.mxu0
        %v829 = vadd.f32 0.0, %v828
        %v830 = vpop.f32.mrf.mxu0
        %v831 = vadd.f32 0.0, %v830
        %832 = vmatmul.bf16.gmra.mxu0 %v791
        %v833 = vpop.f32.mrf.mxu0
        %v834 = vadd.f32 0.0, %v833
        %v835 = vpop.f32.mrf.mxu0
        %v836 = vadd.f32 0.0, %v835
        %837 = vmatmul.bf16.gmra.mxu0 %v794
        %v838 = vpop.f32.mrf.mxu0
        %v839 = vadd.f32 0.0, %v838
        %v840 = vpop.f32.mrf.mxu0
        %v841 = vadd.f32 0.0, %v840
        %842 = vmatmul.bf16.gmra.mxu0 %v797
        %v843 = vpop.f32.mrf.mxu0
        %v844 = vadd.f32 0.0, %v843
        %v845 = vpop.f32.mrf.mxu0
        %846 = vdwg.mxu0
        %847 = vmatpush.bf16.msra.mxu0 0
        %848 = vmatpush.bf16.msra.mxu0 0
        %849 = vmatpush.bf16.msra.mxu0 0
        %850 = vmatpush.bf16.msra.mxu0 0
        %851 = vmatpush.bf16.msra.mxu0 %v766
        %852 = vmatpush.bf16.msra.mxu0 %v764
        %853 = vmatpush.bf16.msra.mxu0 %v762
        %854 = vmatpush.bf16.msra.mxu0 %v760
        %855 = vmatmul.bf16.gmra.mxu0 %v776
        %v856 = vpop.f32.mrf.mxu0
        %v857 = vadd.f32 0.0, %v856
        %v858 = vpop.f32.mrf.mxu0
        %v859 = vadd.f32 0.0, %v858
        %860 = vmatmul.bf16.gmra.mxu0 %v779
        %v861 = vpop.f32.mrf.mxu0
        %v862 = vadd.f32 0.0, %v861
        %v863 = vpop.f32.mrf.mxu0
        %v864 = vadd.f32 0.0, %v863
        %865 = vmatmul.bf16.gmra.mxu0 %v782
        %v866 = vpop.f32.mrf.mxu0
        %v867 = vadd.f32 0.0, %v866
        %v868 = vpop.f32.mrf.mxu0
        %v869 = vadd.f32 0.0, %v868
        %870 = vmatmul.bf16.gmra.mxu0 %v785
        %v871 = vpop.f32.mrf.mxu0
        %v872 = vadd.f32 0.0, %v871
        %v873 = vpop.f32.mrf.mxu0
        %v874 = vadd.f32 0.0, %v873
        %875 = vmatmul.bf16.gmra.mxu0 %v788
        %v876 = vpop.f32.mrf.mxu0
        %v877 = vadd.f32 0.0, %v876
        %v878 = vpop.f32.mrf.mxu0
        %v879 = vadd.f32 0.0, %v878
        %880 = vmatmul.bf16.gmra.mxu0 %v791
        %v881 = vpop.f32.mrf.mxu0
        %v882 = vadd.f32 0.0, %v881
        %v883 = vpop.f32.mrf.mxu0
        %v884 = vadd.f32 0.0, %v883
        %885 = vmatmul.bf16.gmra.mxu0 %v794
        %v886 = vpop.f32.mrf.mxu0
        %v887 = vadd.f32 0.0, %v886
        %v888 = vpop.f32.mrf.mxu0
        %v889 = vadd.f32 0.0, %v888
        %890 = vmatmul.bf16.gmra.mxu0 %v797
        %v891 = vpop.f32.mrf.mxu0
        %v892 = vadd.f32 0.0, %v891
        %v893 = vpop.f32.mrf.mxu0
        %894 = vdwg.mxu0
        %v895 = vadd.f32 %v620, %v809
        %v896 = vadd.f32 %v668, %v857
        %v897 = vadd.f32 %v622, %v811
        %v898 = vadd.f32 %v670, %v859
        %v899 = vadd.f32 %v625, %v814
        %v900 = vadd.f32 %v673, %v862
        %v901 = vadd.f32 %v627, %v816
        %v902 = vadd.f32 %v675, %v864
        %v903 = vadd.f32 %v630, %v819
        %v904 = vadd.f32 %v678, %v867
        %v905 = vadd.f32 %v632, %v821
        %v906 = vadd.f32 %v680, %v869
        %v907 = vadd.f32 %v635, %v824
        %v908 = vadd.f32 %v683, %v872
        %v909 = vadd.f32 %v637, %v826
        %v910 = vadd.f32 %v685, %v874
        %v911 = vadd.f32 %v640, %v829
        %v912 = vadd.f32 %v688, %v877
        %v913 = vadd.f32 %v642, %v831
        %v914 = vadd.f32 %v690, %v879
        %v915 = vadd.f32 %v645, %v834
        %v916 = vadd.f32 %v693, %v882
        %v917 = vadd.f32 %v647, %v836
        %v918 = vadd.f32 %v695, %v884
        %v919 = vadd.f32 %v650, %v839
        %v920 = vadd.f32 %v698, %v887
        %v921 = vadd.f32 %v652, %v841
        %v922 = vadd.f32 %v700, %v889
        %v923 = vadd.f32 %v655, %v844
        %v924 = vadd.f32 %v703, %v892
        %v925 = vld [vmem:[%s243 + $0x8] sm:$0xf]
        %v926 = vld [vmem:[%s243 + $0xc] sm:$0xf]
        %v927 = vld [vmem:[%s243 + $0x10] sm:$0xf]
        %v928 = vld [vmem:[%s243 + $0x14] sm:$0xf]
        %v929 = vld [vmem:[%s243 + $0x18] sm:$0xf]
        %v930 = vld [vmem:[%s243 + $0x1c] sm:$0xf]
        %v931 = vld [vmem:[%s243 + $0x20] sm:$0xf]
        %v932 = vld [vmem:[%s243 + $0x24] sm:$0xf]
        %v933 = vld [vmem:[%s243 + $0x28] sm:$0xf]
        %v934 = vld [vmem:[%s243 + $0x2c] sm:$0xf]
        %v935 = vld [vmem:[%s243 + $0x30] sm:$0xf]
        %v936 = vld [vmem:[%s243 + $0x34] sm:$0xf]
        %v937 = vld [vmem:[%s243 + $0x38] sm:$0xf]
        %v938 = vld [vmem:[%s243 + $0x3c] sm:$0xf]
        %v939 = vld [vmem:[%s243 + $0x40] sm:$0xf]
        %s940 = scalar_lea.vmem [#allocation2], 192
        %v941 = vld [vmem:[%s940] sm:$0xff]
        %v942 = vld [vmem:[%s940 + $0x8] sm:$0xff]
        %v943 = vld [vmem:[%s940 + $0x10] sm:$0xff]
        %v944 = vld [vmem:[%s940 + $0x18] sm:$0xff]
        %v945 = vld [vmem:[%s940 + $0x20] sm:$0xff]
        %v946 = vld [vmem:[%s940 + $0x28] sm:$0xff]
        %v947 = vld [vmem:[%s940 + $0x30] sm:$0xff]
        %v948 = vld [vmem:[%s940 + $0x38] sm:$0xff]
        %v964 = vunpack.c.l.b16 %v925
        %v965 = vunpack.c.l.b16 %v926
        %v966 = vunpack.c.l.b16 %v927
        %v967 = vunpack.c.l.b16 %v928
        %v968 = vunpack.c.l.b16 %v929
        %v969 = vunpack.c.l.b16 %v930
        %v970 = vunpack.c.l.b16 %v931
        %v971 = vunpack.c.l.b16 %v932
        %v972 = vunpack.c.l.b16 %v933
        %v973 = vunpack.c.l.b16 %v934
        %v974 = vunpack.c.l.b16 %v935
        %v975 = vunpack.c.l.b16 %v936
        %v976 = vunpack.c.l.b16 %v937
        %v977 = vunpack.c.l.b16 %v938
        %v978 = vunpack.c.l.b16 %v939
        %v979 = vpack.c.b16 %v965, %v964
        %v980 = vpack.c.b16 %v967, %v966
        %v981 = vpack.c.b16 %v969, %v968
        %v982 = vpack.c.b16 %v971, %v970
        %v983 = vpack.c.b16 %v973, %v972
        %v984 = vpack.c.b16 %v975, %v974
        %v985 = vpack.c.b16 %v977, %v976
        %v986 = vpack.c.b16 %v978, %v978
        %v995 = vunpack.c.l.b16 %v941
        %v996 = vunpack.c.h.b16 %v941
        %v997 = vunpack.c.l.b16 %v942
        %v998 = vunpack.c.h.b16 %v942
        %v999 = vunpack.c.l.b16 %v943
        %v1000 = vunpack.c.h.b16 %v943
        %v1001 = vunpack.c.l.b16 %v944
        %v1002 = vunpack.c.h.b16 %v944
        %v1003 = vunpack.c.l.b16 %v945
        %v1004 = vunpack.c.h.b16 %v945
        %v1005 = vunpack.c.l.b16 %v946
        %v1006 = vunpack.c.h.b16 %v946
        %v1007 = vunpack.c.l.b16 %v947
        %v1008 = vunpack.c.h.b16 %v947
        %v1009 = vunpack.c.l.b16 %v948
        %v1010 = vunpack.c.h.b16 %v948
        %v1011 = vpack.c.b16 %v997, %v995
        %v1012 = vpack.c.b16 %v998, %v996
        %v1013 = vpack.c.b16 %v1001, %v999
        %v1014 = vpack.c.b16 %v1002, %v1000
        %v1015 = vpack.c.b16 %v1005, %v1003
        %v1016 = vpack.c.b16 %v1006, %v1004
        %v1017 = vpack.c.b16 %v1009, %v1007
        %v1018 = vpack.c.b16 %v1010, %v1008
        %v1028 = vsel %vm431, %v979, 0
        %v1031 = vsel %vm431, %v980, 0
        %v1034 = vsel %vm431, %v981, 0
        %v1037 = vsel %vm431, %v982, 0
        %v1040 = vsel %vm431, %v983, 0
        %v1043 = vsel %vm431, %v984, 0
        %v1046 = vsel %vm431, %v985, 0
        %v1049 = vsel %vm431, %v986, 0
        %1051 = vmatpush.bf16.msra.mxu0 0
        %1052 = vmatpush.bf16.msra.mxu0 0
        %1053 = vmatpush.bf16.msra.mxu0 0
        %1054 = vmatpush.bf16.msra.mxu0 0
        %1055 = vmatpush.bf16.msra.mxu0 %v1017
        %1056 = vmatpush.bf16.msra.mxu0 %v1015
        %1057 = vmatpush.bf16.msra.mxu0 %v1013
        %1058 = vmatpush.bf16.msra.mxu0 %v1011
        %1059 = vmatmul.bf16.gmra.mxu0 %v1028
        %v1060 = vpop.f32.mrf.mxu0
        %v1061 = vadd.f32 0.0, %v1060
        %v1062 = vpop.f32.mrf.mxu0
        %v1063 = vadd.f32 0.0, %v1062
        %1064 = vmatmul.bf16.gmra.mxu0 %v1031
        %v1065 = vpop.f32.mrf.mxu0
        %v1066 = vadd.f32 0.0, %v1065
        %v1067 = vpop.f32.mrf.mxu0
        %v1068 = vadd.f32 0.0, %v1067
        %1069 = vmatmul.bf16.gmra.mxu0 %v1034
        %v1070 = vpop.f32.mrf.mxu0
        %v1071 = vadd.f32 0.0, %v1070
        %v1072 = vpop.f32.mrf.mxu0
        %v1073 = vadd.f32 0.0, %v1072
        %1074 = vmatmul.bf16.gmra.mxu0 %v1037
        %v1075 = vpop.f32.mrf.mxu0
        %v1076 = vadd.f32 0.0, %v1075
        %v1077 = vpop.f32.mrf.mxu0
        %v1078 = vadd.f32 0.0, %v1077
        %1079 = vmatmul.bf16.gmra.mxu0 %v1040
        %v1080 = vpop.f32.mrf.mxu0
        %v1081 = vadd.f32 0.0, %v1080
        %v1082 = vpop.f32.mrf.mxu0
        %v1083 = vadd.f32 0.0, %v1082
        %1084 = vmatmul.bf16.gmra.mxu0 %v1043
        %v1085 = vpop.f32.mrf.mxu0
        %v1086 = vadd.f32 0.0, %v1085
        %v1087 = vpop.f32.mrf.mxu0
        %v1088 = vadd.f32 0.0, %v1087
        %1089 = vmatmul.bf16.gmra.mxu0 %v1046
        %v1090 = vpop.f32.mrf.mxu0
        %v1091 = vadd.f32 0.0, %v1090
        %v1092 = vpop.f32.mrf.mxu0
        %v1093 = vadd.f32 0.0, %v1092
        %1094 = vmatmul.bf16.gmra.mxu0 %v1049
        %v1095 = vpop.f32.mrf.mxu0
        %v1096 = vadd.f32 0.0, %v1095
        %v1097 = vpop.f32.mrf.mxu0
        %1098 = vdwg.mxu0
        %1099 = vmatpush.bf16.msra.mxu0 0
        %1100 = vmatpush.bf16.msra.mxu0 0
        %1101 = vmatpush.bf16.msra.mxu0 0
        %1102 = vmatpush.bf16.msra.mxu0 0
        %1103 = vmatpush.bf16.msra.mxu0 %v1018
        %1104 = vmatpush.bf16.msra.mxu0 %v1016
        %1105 = vmatpush.bf16.msra.mxu0 %v1014
        %1106 = vmatpush.bf16.msra.mxu0 %v1012
        %1107 = vmatmul.bf16.gmra.mxu0 %v1028
        %v1108 = vpop.f32.mrf.mxu0
        %v1109 = vadd.f32 0.0, %v1108
        %v1110 = vpop.f32.mrf.mxu0
        %v1111 = vadd.f32 0.0, %v1110
        %1112 = vmatmul.bf16.gmra.mxu0 %v1031
        %v1113 = vpop.f32.mrf.mxu0
        %v1114 = vadd.f32 0.0, %v1113
        %v1115 = vpop.f32.mrf.mxu0
        %v1116 = vadd.f32 0.0, %v1115
        %1117 = vmatmul.bf16.gmra.mxu0 %v1034
        %v1118 = vpop.f32.mrf.mxu0
        %v1119 = vadd.f32 0.0, %v1118
        %v1120 = vpop.f32.mrf.mxu0
        %v1121 = vadd.f32 0.0, %v1120
        %1122 = vmatmul.bf16.gmra.mxu0 %v1037
        %v1123 = vpop.f32.mrf.mxu0
        %v1124 = vadd.f32 0.0, %v1123
        %v1125 = vpop.f32.mrf.mxu0
        %v1126 = vadd.f32 0.0, %v1125
        %1127 = vmatmul.bf16.gmra.mxu0 %v1040
        %v1128 = vpop.f32.mrf.mxu0
        %v1129 = vadd.f32 0.0, %v1128
        %v1130 = vpop.f32.mrf.mxu0
        %v1131 = vadd.f32 0.0, %v1130
        %1132 = vmatmul.bf16.gmra.mxu0 %v1043
        %v1133 = vpop.f32.mrf.mxu0
        %v1134 = vadd.f32 0.0, %v1133
        %v1135 = vpop.f32.mrf.mxu0
        %v1136 = vadd.f32 0.0, %v1135
        %1137 = vmatmul.bf16.gmra.mxu0 %v1046
        %v1138 = vpop.f32.mrf.mxu0
        %v1139 = vadd.f32 0.0, %v1138
        %v1140 = vpop.f32.mrf.mxu0
        %v1141 = vadd.f32 0.0, %v1140
        %1142 = vmatmul.bf16.gmra.mxu0 %v1049
        %v1143 = vpop.f32.mrf.mxu0
        %v1144 = vadd.f32 0.0, %v1143
        %v1145 = vpop.f32.mrf.mxu0
        %1146 = vdwg.mxu0
        %v1147 = vadd.f32 %v895, %v1061
        %v1148 = vadd.f32 %v896, %v1109
        %v1149 = vadd.f32 %v897, %v1063
        %v1150 = vadd.f32 %v898, %v1111
        %v1151 = vadd.f32 %v899, %v1066
        %v1152 = vadd.f32 %v900, %v1114
        %v1153 = vadd.f32 %v901, %v1068
        %v1154 = vadd.f32 %v902, %v1116
        %v1155 = vadd.f32 %v903, %v1071
        %v1156 = vadd.f32 %v904, %v1119
        %v1157 = vadd.f32 %v905, %v1073
        %v1158 = vadd.f32 %v906, %v1121
        %v1159 = vadd.f32 %v907, %v1076
        %v1160 = vadd.f32 %v908, %v1124
        %v1161 = vadd.f32 %v909, %v1078
        %v1162 = vadd.f32 %v910, %v1126
        %v1163 = vadd.f32 %v911, %v1081
        %v1164 = vadd.f32 %v912, %v1129
        %v1165 = vadd.f32 %v913, %v1083
        %v1166 = vadd.f32 %v914, %v1131
        %v1167 = vadd.f32 %v915, %v1086
        %v1168 = vadd.f32 %v916, %v1134
        %v1169 = vadd.f32 %v917, %v1088
        %v1170 = vadd.f32 %v918, %v1136
        %v1171 = vadd.f32 %v919, %v1091
        %v1172 = vadd.f32 %v920, %v1139
        %v1173 = vadd.f32 %v921, %v1093
        %v1174 = vadd.f32 %v922, %v1141
        %v1175 = vadd.f32 %v923, %v1096
        %v1176 = vadd.f32 %v924, %v1144
        %v1177 = vld [vmem:[%s243 + $0x8] sm:$0xf]
        %v1178 = vld [vmem:[%s243 + $0xc] sm:$0xf]
        %v1179 = vld [vmem:[%s243 + $0x10] sm:$0xf]
        %v1180 = vld [vmem:[%s243 + $0x14] sm:$0xf]
        %v1181 = vld [vmem:[%s243 + $0x18] sm:$0xf]
        %v1182 = vld [vmem:[%s243 + $0x1c] sm:$0xf]
        %v1183 = vld [vmem:[%s243 + $0x20] sm:$0xf]
        %v1184 = vld [vmem:[%s243 + $0x24] sm:$0xf]
        %v1185 = vld [vmem:[%s243 + $0x28] sm:$0xf]
        %v1186 = vld [vmem:[%s243 + $0x2c] sm:$0xf]
        %v1187 = vld [vmem:[%s243 + $0x30] sm:$0xf]
        %v1188 = vld [vmem:[%s243 + $0x34] sm:$0xf]
        %v1189 = vld [vmem:[%s243 + $0x38] sm:$0xf]
        %v1190 = vld [vmem:[%s243 + $0x3c] sm:$0xf]
        %v1191 = vld [vmem:[%s243 + $0x40] sm:$0xf]
        %v1192 = vld [vmem:[%s243 + $0x44] sm:$0x1]
        %s1193 = scalar_lea.vmem [#allocation2], 256
        %v1194 = vld [vmem:[%s1193] sm:$0xff]
        %v1195 = vld [vmem:[%s1193 + $0x8] sm:$0xff]
        %v1196 = vld [vmem:[%s1193 + $0x10] sm:$0xff]
        %v1197 = vld [vmem:[%s1193 + $0x18] sm:$0xff]
        %v1198 = vld [vmem:[%s1193 + $0x20] sm:$0xff]
        %v1199 = vld [vmem:[%s1193 + $0x28] sm:$0xff]
        %v1200 = vld [vmem:[%s1193 + $0x30] sm:$0xff]
        %v1201 = vld [vmem:[%s1193 + $0x38] sm:$0xff]
        %v1218 = vunpack.c.l.b16 %v1177
        %v1219 = vunpack.c.l.b16 %v1178
        %v1220 = vunpack.c.l.b16 %v1179
        %v1221 = vunpack.c.l.b16 %v1180
        %v1222 = vunpack.c.l.b16 %v1181
        %v1223 = vunpack.c.l.b16 %v1182
        %v1224 = vunpack.c.l.b16 %v1183
        %v1225 = vunpack.c.l.b16 %v1184
        %v1226 = vunpack.c.l.b16 %v1185
        %v1227 = vunpack.c.l.b16 %v1186
        %v1228 = vunpack.c.l.b16 %v1187
        %v1229 = vunpack.c.l.b16 %v1188
        %v1230 = vunpack.c.l.b16 %v1189
        %v1231 = vunpack.c.l.b16 %v1190
        %v1232 = vunpack.c.l.b16 %v1191
        %v1233 = vunpack.c.l.b16 %v1192
        %v1234 = vpack.c.b16 %v1219, %v1218
        %v1235 = vpack.c.b16 %v1221, %v1220
        %v1236 = vpack.c.b16 %v1223, %v1222
        %v1237 = vpack.c.b16 %v1225, %v1224
        %v1238 = vpack.c.b16 %v1227, %v1226
        %v1239 = vpack.c.b16 %v1229, %v1228
        %v1240 = vpack.c.b16 %v1231, %v1230
        %v1241 = vpack.c.b16 %v1233, %v1232
        %v1243 = vshrl.u32 %v1234, 16
        %v1245 = vshll.u32 %v1234, 16
        %v1247 = vrot.slane %v1245, 1
        %v1248 = vor.u32 %v1243, %v1247
        %v1250 = vshll.u32 %v1235, 16
        %v1252 = vrot.slane %v1250, 1
        %v1253 = vsel %vm327, %v1248, %v1252
        %v1254 = vshrl.u32 %v1235, 16
        %v1256 = vor.u32 %v1254, %v1252
        %v1258 = vshll.u32 %v1236, 16
        %v1260 = vrot.slane %v1258, 1
        %v1261 = vsel %vm327, %v1256, %v1260
        %v1262 = vshrl.u32 %v1236, 16
        %v1264 = vor.u32 %v1262, %v1260
        %v1266 = vshll.u32 %v1237, 16
        %v1268 = vrot.slane %v1266, 1
        %v1269 = vsel %vm327, %v1264, %v1268
        %v1270 = vshrl.u32 %v1237, 16
        %v1272 = vor.u32 %v1270, %v1268
        %v1274 = vshll.u32 %v1238, 16
        %v1276 = vrot.slane %v1274, 1
        %v1277 = vsel %vm327, %v1272, %v1276
        %v1278 = vshrl.u32 %v1238, 16
        %v1280 = vor.u32 %v1278, %v1276
        %v1282 = vshll.u32 %v1239, 16
        %v1284 = vrot.slane %v1282, 1
        %v1285 = vsel %vm327, %v1280, %v1284
        %v1286 = vshrl.u32 %v1239, 16
        %v1288 = vor.u32 %v1286, %v1284
        %v1290 = vshll.u32 %v1240, 16
        %v1292 = vrot.slane %v1290, 1
        %v1293 = vsel %vm327, %v1288, %v1292
        %v1294 = vshrl.u32 %v1240, 16
        %v1296 = vor.u32 %v1294, %v1292
        %v1298 = vshll.u32 %v1241, 16
        %v1300 = vrot.slane %v1298, 1
        %v1301 = vsel %vm327, %v1296, %v1300
        %v1302 = vshrl.u32 %v1241, 16
        %v1304 = vor.u32 %v1302, %v1300
        %v1313 = vunpack.c.l.b16 %v1194
        %v1314 = vunpack.c.h.b16 %v1194
        %v1315 = vunpack.c.l.b16 %v1195
        %v1316 = vunpack.c.h.b16 %v1195
        %v1317 = vunpack.c.l.b16 %v1196
        %v1318 = vunpack.c.h.b16 %v1196
        %v1319 = vunpack.c.l.b16 %v1197
        %v1320 = vunpack.c.h.b16 %v1197
        %v1321 = vunpack.c.l.b16 %v1198
        %v1322 = vunpack.c.h.b16 %v1198
        %v1323 = vunpack.c.l.b16 %v1199
        %v1324 = vunpack.c.h.b16 %v1199
        %v1325 = vunpack.c.l.b16 %v1200
        %v1326 = vunpack.c.h.b16 %v1200
        %v1327 = vunpack.c.l.b16 %v1201
        %v1328 = vunpack.c.h.b16 %v1201
        %v1329 = vpack.c.b16 %v1315, %v1313
        %v1330 = vpack.c.b16 %v1316, %v1314
        %v1331 = vpack.c.b16 %v1319, %v1317
        %v1332 = vpack.c.b16 %v1320, %v1318
        %v1333 = vpack.c.b16 %v1323, %v1321
        %v1334 = vpack.c.b16 %v1324, %v1322
        %v1335 = vpack.c.b16 %v1327, %v1325
        %v1336 = vpack.c.b16 %v1328, %v1326
        %v1346 = vsel %vm431, %v1253, 0
        %v1349 = vsel %vm431, %v1261, 0
        %v1352 = vsel %vm431, %v1269, 0
        %v1355 = vsel %vm431, %v1277, 0
        %v1358 = vsel %vm431, %v1285, 0
        %v1361 = vsel %vm431, %v1293, 0
        %v1364 = vsel %vm431, %v1301, 0
        %v1367 = vsel %vm431, %v1304, 0
        %1369 = vmatpush.bf16.msra.mxu0 0
        %1370 = vmatpush.bf16.msra.mxu0 0
        %1371 = vmatpush.bf16.msra.mxu0 0
        %1372 = vmatpush.bf16.msra.mxu0 0
        %1373 = vmatpush.bf16.msra.mxu0 %v1335
        %1374 = vmatpush.bf16.msra.mxu0 %v1333
        %1375 = vmatpush.bf16.msra.mxu0 %v1331
        %1376 = vmatpush.bf16.msra.mxu0 %v1329
        %1377 = vmatmul.bf16.gmra.mxu0 %v1346
        %v1378 = vpop.f32.mrf.mxu0
        %v1379 = vadd.f32 0.0, %v1378
        %v1380 = vpop.f32.mrf.mxu0
        %v1381 = vadd.f32 0.0, %v1380
        %1382 = vmatmul.bf16.gmra.mxu0 %v1349
        %v1383 = vpop.f32.mrf.mxu0
        %v1384 = vadd.f32 0.0, %v1383
        %v1385 = vpop.f32.mrf.mxu0
        %v1386 = vadd.f32 0.0, %v1385
        %1387 = vmatmul.bf16.gmra.mxu0 %v1352
        %v1388 = vpop.f32.mrf.mxu0
        %v1389 = vadd.f32 0.0, %v1388
        %v1390 = vpop.f32.mrf.mxu0
        %v1391 = vadd.f32 0.0, %v1390
        %1392 = vmatmul.bf16.gmra.mxu0 %v1355
        %v1393 = vpop.f32.mrf.mxu0
        %v1394 = vadd.f32 0.0, %v1393
        %v1395 = vpop.f32.mrf.mxu0
        %v1396 = vadd.f32 0.0, %v1395
        %1397 = vmatmul.bf16.gmra.mxu0 %v1358
        %v1398 = vpop.f32.mrf.mxu0
        %v1399 = vadd.f32 0.0, %v1398
        %v1400 = vpop.f32.mrf.mxu0
        %v1401 = vadd.f32 0.0, %v1400
        %1402 = vmatmul.bf16.gmra.mxu0 %v1361
        %v1403 = vpop.f32.mrf.mxu0
        %v1404 = vadd.f32 0.0, %v1403
        %v1405 = vpop.f32.mrf.mxu0
        %v1406 = vadd.f32 0.0, %v1405
        %1407 = vmatmul.bf16.gmra.mxu0 %v1364
        %v1408 = vpop.f32.mrf.mxu0
        %v1409 = vadd.f32 0.0, %v1408
        %v1410 = vpop.f32.mrf.mxu0
        %v1411 = vadd.f32 0.0, %v1410
        %1412 = vmatmul.bf16.gmra.mxu0 %v1367
        %v1413 = vpop.f32.mrf.mxu0
        %v1414 = vadd.f32 0.0, %v1413
        %v1415 = vpop.f32.mrf.mxu0
        %1416 = vdwg.mxu0
        %1417 = vmatpush.bf16.msra.mxu0 0
        %1418 = vmatpush.bf16.msra.mxu0 0
        %1419 = vmatpush.bf16.msra.mxu0 0
        %1420 = vmatpush.bf16.msra.mxu0 0
        %1421 = vmatpush.bf16.msra.mxu0 %v1336
        %1422 = vmatpush.bf16.msra.mxu0 %v1334
        %1423 = vmatpush.bf16.msra.mxu0 %v1332
        %1424 = vmatpush.bf16.msra.mxu0 %v1330
        %1425 = vmatmul.bf16.gmra.mxu0 %v1346
        %v1426 = vpop.f32.mrf.mxu0
        %v1427 = vadd.f32 0.0, %v1426
        %v1428 = vpop.f32.mrf.mxu0
        %v1429 = vadd.f32 0.0, %v1428
        %1430 = vmatmul.bf16.gmra.mxu0 %v1349
        %v1431 = vpop.f32.mrf.mxu0
        %v1432 = vadd.f32 0.0, %v1431
        %v1433 = vpop.f32.mrf.mxu0
        %v1434 = vadd.f32 0.0, %v1433
        %1435 = vmatmul.bf16.gmra.mxu0 %v1352
        %v1436 = vpop.f32.mrf.mxu0
        %v1437 = vadd.f32 0.0, %v1436
        %v1438 = vpop.f32.mrf.mxu0
        %v1439 = vadd.f32 0.0, %v1438
        %1440 = vmatmul.bf16.gmra.mxu0 %v1355
        %v1441 = vpop.f32.mrf.mxu0
        %v1442 = vadd.f32 0.0, %v1441
        %v1443 = vpop.f32.mrf.mxu0
        %v1444 = vadd.f32 0.0, %v1443
        %1445 = vmatmul.bf16.gmra.mxu0 %v1358
        %v1446 = vpop.f32.mrf.mxu0
        %v1447 = vadd.f32 0.0, %v1446
        %v1448 = vpop.f32.mrf.mxu0
        %v1449 = vadd.f32 0.0, %v1448
        %1450 = vmatmul.bf16.gmra.mxu0 %v1361
        %v1451 = vpop.f32.mrf.mxu0
        %v1452 = vadd.f32 0.0, %v1451
        %v1453 = vpop.f32.mrf.mxu0
        %v1454 = vadd.f32 0.0, %v1453
        %1455 = vmatmul.bf16.gmra.mxu0 %v1364
        %v1456 = vpop.f32.mrf.mxu0
        %v1457 = vadd.f32 0.0, %v1456
        %v1458 = vpop.f32.mrf.mxu0
        %v1459 = vadd.f32 0.0, %v1458
        %1460 = vmatmul.bf16.gmra.mxu0 %v1367
        %v1461 = vpop.f32.mrf.mxu0
        %v1462 = vadd.f32 0.0, %v1461
        %v1463 = vpop.f32.mrf.mxu0
        %1464 = vdwg.mxu0
        %v1465 = vadd.f32 %v1147, %v1379
        %v1466 = vadd.f32 %v1148, %v1427
        %v1467 = vadd.f32 %v1149, %v1381
        %v1468 = vadd.f32 %v1150, %v1429
        %v1469 = vadd.f32 %v1151, %v1384
        %v1470 = vadd.f32 %v1152, %v1432
        %v1471 = vadd.f32 %v1153, %v1386
        %v1472 = vadd.f32 %v1154, %v1434
        %v1473 = vadd.f32 %v1155, %v1389
        %v1474 = vadd.f32 %v1156, %v1437
        %v1475 = vadd.f32 %v1157, %v1391
        %v1476 = vadd.f32 %v1158, %v1439
        %v1477 = vadd.f32 %v1159, %v1394
        %v1478 = vadd.f32 %v1160, %v1442
        %v1479 = vadd.f32 %v1161, %v1396
        %v1480 = vadd.f32 %v1162, %v1444
        %v1481 = vadd.f32 %v1163, %v1399
        %v1482 = vadd.f32 %v1164, %v1447
        %v1483 = vadd.f32 %v1165, %v1401
        %v1484 = vadd.f32 %v1166, %v1449
        %v1485 = vadd.f32 %v1167, %v1404
        %v1486 = vadd.f32 %v1168, %v1452
        %v1487 = vadd.f32 %v1169, %v1406
        %v1488 = vadd.f32 %v1170, %v1454
        %v1489 = vadd.f32 %v1171, %v1409
        %v1490 = vadd.f32 %v1172, %v1457
        %v1491 = vadd.f32 %v1173, %v1411
        %v1492 = vadd.f32 %v1174, %v1459
        %v1493 = vadd.f32 %v1175, %v1414
        %v1494 = vadd.f32 %v1176, %v1462
        %v1495 = vld [vmem:[%s243 + $0x8] sm:$0xe]
        %s1496 = scalar_lea.vmem [#allocation2], 320
        %v1497 = vld [vmem:[%s1496] sm:$0xff]
        %v1498 = vld [vmem:[%s1496 + $0x8] sm:$0xff]
        %v1499 = vld [vmem:[%s1496 + $0x10] sm:$0xff]
        %v1500 = vld [vmem:[%s1496 + $0x18] sm:$0xff]
        %v1501 = vld [vmem:[%s1496 + $0x20] sm:$0xff]
        %v1502 = vld [vmem:[%s1496 + $0x28] sm:$0xff]
        %v1503 = vld [vmem:[%s1496 + $0x30] sm:$0xff]
        %v1504 = vld [vmem:[%s1496 + $0x38] sm:$0xff]
        %v1506 = vunpack.c.l.b16 %v1495
        %v1507 = vpack.c.b16 %v1219, %v1506
        %v1508 = vrot.slane %v1507, 1
        %v1509 = vrot.slane %v1235, 1
        %v1510 = vsel %vm719, %v1508, %v1509
        %v1511 = vrot.slane %v1236, 1
        %v1512 = vsel %vm719, %v1509, %v1511
        %v1513 = vrot.slane %v1237, 1
        %v1514 = vsel %vm719, %v1511, %v1513
        %v1515 = vrot.slane %v1238, 1
        %v1516 = vsel %vm719, %v1513, %v1515
        %v1517 = vrot.slane %v1239, 1
        %v1518 = vsel %vm719, %v1515, %v1517
        %v1519 = vrot.slane %v1240, 1
        %v1520 = vsel %vm719, %v1517, %v1519
        %v1521 = vrot.slane %v1241, 1
        %v1522 = vsel %vm719, %v1519, %v1521
        %v1531 = vunpack.c.l.b16 %v1497
        %v1532 = vunpack.c.h.b16 %v1497
        %v1533 = vunpack.c.l.b16 %v1498
        %v1534 = vunpack.c.h.b16 %v1498
        %v1535 = vunpack.c.l.b16 %v1499
        %v1536 = vunpack.c.h.b16 %v1499
        %v1537 = vunpack.c.l.b16 %v1500
        %v1538 = vunpack.c.h.b16 %v1500
        %v1539 = vunpack.c.l.b16 %v1501
        %v1540 = vunpack.c.h.b16 %v1501
        %v1541 = vunpack.c.l.b16 %v1502
        %v1542 = vunpack.c.h.b16 %v1502
        %v1543 = vunpack.c.l.b16 %v1503
        %v1544 = vunpack.c.h.b16 %v1503
        %v1545 = vunpack.c.l.b16 %v1504
        %v1546 = vunpack.c.h.b16 %v1504
        %v1547 = vpack.c.b16 %v1533, %v1531
        %v1548 = vpack.c.b16 %v1534, %v1532
        %v1549 = vpack.c.b16 %v1537, %v1535
        %v1550 = vpack.c.b16 %v1538, %v1536
        %v1551 = vpack.c.b16 %v1541, %v1539
        %v1552 = vpack.c.b16 %v1542, %v1540
        %v1553 = vpack.c.b16 %v1545, %v1543
        %v1554 = vpack.c.b16 %v1546, %v1544
        %v1564 = vsel %vm431, %v1510, 0
        %v1567 = vsel %vm431, %v1512, 0
        %v1570 = vsel %vm431, %v1514, 0
        %v1573 = vsel %vm431, %v1516, 0
        %v1576 = vsel %vm431, %v1518, 0
        %v1579 = vsel %vm431, %v1520, 0
        %v1582 = vsel %vm431, %v1522, 0
        %v1585 = vsel %vm431, %v1521, 0
        %1587 = vmatpush.bf16.msra.mxu0 0
        %1588 = vmatpush.bf16.msra.mxu0 0
        %1589 = vmatpush.bf16.msra.mxu0 0
        %1590 = vmatpush.bf16.msra.mxu0 0
        %1591 = vmatpush.bf16.msra.mxu0 %v1553
        %1592 = vmatpush.bf16.msra.mxu0 %v1551
        %1593 = vmatpush.bf16.msra.mxu0 %v1549
        %1594 = vmatpush.bf16.msra.mxu0 %v1547
        %1595 = vmatmul.bf16.gmra.mxu0 %v1564
        %v1596 = vpop.f32.mrf.mxu0
        %v1597 = vadd.f32 0.0, %v1596
        %v1598 = vpop.f32.mrf.mxu0
        %v1599 = vadd.f32 0.0, %v1598
        %1600 = vmatmul.bf16.gmra.mxu0 %v1567
        %v1601 = vpop.f32.mrf.mxu0
        %v1602 = vadd.f32 0.0, %v1601
        %v1603 = vpop.f32.mrf.mxu0
        %v1604 = vadd.f32 0.0, %v1603
        %1605 = vmatmul.bf16.gmra.mxu0 %v1570
        %v1606 = vpop.f32.mrf.mxu0
        %v1607 = vadd.f32 0.0, %v1606
        %v1608 = vpop.f32.mrf.mxu0
        %v1609 = vadd.f32 0.0, %v1608
        %1610 = vmatmul.bf16.gmra.mxu0 %v1573
        %v1611 = vpop.f32.mrf.mxu0
        %v1612 = vadd.f32 0.0, %v1611
        %v1613 = vpop.f32.mrf.mxu0
        %v1614 = vadd.f32 0.0, %v1613
        %1615 = vmatmul.bf16.gmra.mxu0 %v1576
        %v1616 = vpop.f32.mrf.mxu0
        %v1617 = vadd.f32 0.0, %v1616
        %v1618 = vpop.f32.mrf.mxu0
        %v1619 = vadd.f32 0.0, %v1618
        %1620 = vmatmul.bf16.gmra.mxu0 %v1579
        %v1621 = vpop.f32.mrf.mxu0
        %v1622 = vadd.f32 0.0, %v1621
        %v1623 = vpop.f32.mrf.mxu0
        %v1624 = vadd.f32 0.0, %v1623
        %1625 = vmatmul.bf16.gmra.mxu0 %v1582
        %v1626 = vpop.f32.mrf.mxu0
        %v1627 = vadd.f32 0.0, %v1626
        %v1628 = vpop.f32.mrf.mxu0
        %v1629 = vadd.f32 0.0, %v1628
        %1630 = vmatmul.bf16.gmra.mxu0 %v1585
        %v1631 = vpop.f32.mrf.mxu0
        %v1632 = vadd.f32 0.0, %v1631
        %v1633 = vpop.f32.mrf.mxu0
        %1634 = vdwg.mxu0
        %1635 = vmatpush.bf16.msra.mxu0 0
        %1636 = vmatpush.bf16.msra.mxu0 0
        %1637 = vmatpush.bf16.msra.mxu0 0
        %1638 = vmatpush.bf16.msra.mxu0 0
        %1639 = vmatpush.bf16.msra.mxu0 %v1554
        %1640 = vmatpush.bf16.msra.mxu0 %v1552
        %1641 = vmatpush.bf16.msra.mxu0 %v1550
        %1642 = vmatpush.bf16.msra.mxu0 %v1548
        %1643 = vmatmul.bf16.gmra.mxu0 %v1564
        %v1644 = vpop.f32.mrf.mxu0
        %v1645 = vadd.f32 0.0, %v1644
        %v1646 = vpop.f32.mrf.mxu0
        %v1647 = vadd.f32 0.0, %v1646
        %1648 = vmatmul.bf16.gmra.mxu0 %v1567
        %v1649 = vpop.f32.mrf.mxu0
        %v1650 = vadd.f32 0.0, %v1649
        %v1651 = vpop.f32.mrf.mxu0
        %v1652 = vadd.f32 0.0, %v1651
        %1653 = vmatmul.bf16.gmra.mxu0 %v1570
        %v1654 = vpop.f32.mrf.mxu0
        %v1655 = vadd.f32 0.0, %v1654
        %v1656 = vpop.f32.mrf.mxu0
        %v1657 = vadd.f32 0.0, %v1656
        %1658 = vmatmul.bf16.gmra.mxu0 %v1573
        %v1659 = vpop.f32.mrf.mxu0
        %v1660 = vadd.f32 0.0, %v1659
        %v1661 = vpop.f32.mrf.mxu0
        %v1662 = vadd.f32 0.0, %v1661
        %1663 = vmatmul.bf16.gmra.mxu0 %v1576
        %v1664 = vpop.f32.mrf.mxu0
        %v1665 = vadd.f32 0.0, %v1664
        %v1666 = vpop.f32.mrf.mxu0
        %v1667 = vadd.f32 0.0, %v1666
        %1668 = vmatmul.bf16.gmra.mxu0 %v1579
        %v1669 = vpop.f32.mrf.mxu0
        %v1670 = vadd.f32 0.0, %v1669
        %v1671 = vpop.f32.mrf.mxu0
        %v1672 = vadd.f32 0.0, %v1671
        %1673 = vmatmul.bf16.gmra.mxu0 %v1582
        %v1674 = vpop.f32.mrf.mxu0
        %v1675 = vadd.f32 0.0, %v1674
        %v1676 = vpop.f32.mrf.mxu0
        %v1677 = vadd.f32 0.0, %v1676
        %1678 = vmatmul.bf16.gmra.mxu0 %v1585
        %v1679 = vpop.f32.mrf.mxu0
        %v1680 = vadd.f32 0.0, %v1679
        %v1681 = vpop.f32.mrf.mxu0
        %1682 = vdwg.mxu0
        %v1683 = vadd.f32 %v1465, %v1597
        %v1684 = vadd.f32 %v1466, %v1645
        %v1685 = vadd.f32 %v1467, %v1599
        %v1686 = vadd.f32 %v1468, %v1647
        %v1687 = vadd.f32 %v1469, %v1602
        %v1688 = vadd.f32 %v1470, %v1650
        %v1689 = vadd.f32 %v1471, %v1604
        %v1690 = vadd.f32 %v1472, %v1652
        %v1691 = vadd.f32 %v1473, %v1607
        %v1692 = vadd.f32 %v1474, %v1655
        %v1693 = vadd.f32 %v1475, %v1609
        %v1694 = vadd.f32 %v1476, %v1657
        %v1695 = vadd.f32 %v1477, %v1612
        %v1696 = vadd.f32 %v1478, %v1660
        %v1697 = vadd.f32 %v1479, %v1614
        %v1698 = vadd.f32 %v1480, %v1662
        %v1699 = vadd.f32 %v1481, %v1617
        %v1700 = vadd.f32 %v1482, %v1665
        %v1701 = vadd.f32 %v1483, %v1619
        %v1702 = vadd.f32 %v1484, %v1667
        %v1703 = vadd.f32 %v1485, %v1622
        %v1704 = vadd.f32 %v1486, %v1670
        %v1705 = vadd.f32 %v1487, %v1624
        %v1706 = vadd.f32 %v1488, %v1672
        %v1707 = vadd.f32 %v1489, %v1627
        %v1708 = vadd.f32 %v1490, %v1675
        %v1709 = vadd.f32 %v1491, %v1629
        %v1710 = vadd.f32 %v1492, %v1677
        %v1711 = vadd.f32 %v1493, %v1632
        %v1712 = vadd.f32 %v1494, %v1680
        %v1713 = vld [vmem:[%s243 + $0x10] sm:$0xf]
        %v1714 = vld [vmem:[%s243 + $0x14] sm:$0xf]
        %v1715 = vld [vmem:[%s243 + $0x18] sm:$0xf]
        %v1716 = vld [vmem:[%s243 + $0x1c] sm:$0xf]
        %v1717 = vld [vmem:[%s243 + $0x20] sm:$0xf]
        %v1718 = vld [vmem:[%s243 + $0x24] sm:$0xf]
        %v1719 = vld [vmem:[%s243 + $0x28] sm:$0xf]
        %v1720 = vld [vmem:[%s243 + $0x2c] sm:$0xf]
        %v1721 = vld [vmem:[%s243 + $0x30] sm:$0xf]
        %v1722 = vld [vmem:[%s243 + $0x34] sm:$0xf]
        %v1723 = vld [vmem:[%s243 + $0x38] sm:$0xf]
        %v1724 = vld [vmem:[%s243 + $0x3c] sm:$0xf]
        %v1725 = vld [vmem:[%s243 + $0x40] sm:$0xf]
        %v1726 = vld [vmem:[%s243 + $0x44] sm:$0xf]
        %v1727 = vld [vmem:[%s243 + $0x48] sm:$0xf]
        %s1728 = scalar_lea.vmem [#allocation2], 384
        %v1729 = vld [vmem:[%s1728] sm:$0xff]
        %v1730 = vld [vmem:[%s1728 + $0x8] sm:$0xff]
        %v1731 = vld [vmem:[%s1728 + $0x10] sm:$0xff]
        %v1732 = vld [vmem:[%s1728 + $0x18] sm:$0xff]
        %v1733 = vld [vmem:[%s1728 + $0x20] sm:$0xff]
        %v1734 = vld [vmem:[%s1728 + $0x28] sm:$0xff]
        %v1735 = vld [vmem:[%s1728 + $0x30] sm:$0xff]
        %v1736 = vld [vmem:[%s1728 + $0x38] sm:$0xff]
        %v1752 = vunpack.c.l.b16 %v1713
        %v1753 = vunpack.c.l.b16 %v1714
        %v1754 = vunpack.c.l.b16 %v1715
        %v1755 = vunpack.c.l.b16 %v1716
        %v1756 = vunpack.c.l.b16 %v1717
        %v1757 = vunpack.c.l.b16 %v1718
        %v1758 = vunpack.c.l.b16 %v1719
        %v1759 = vunpack.c.l.b16 %v1720
        %v1760 = vunpack.c.l.b16 %v1721
        %v1761 = vunpack.c.l.b16 %v1722
        %v1762 = vunpack.c.l.b16 %v1723
        %v1763 = vunpack.c.l.b16 %v1724
        %v1764 = vunpack.c.l.b16 %v1725
        %v1765 = vunpack.c.l.b16 %v1726
        %v1766 = vunpack.c.l.b16 %v1727
        %v1767 = vpack.c.b16 %v1753, %v1752
        %v1768 = vpack.c.b16 %v1755, %v1754
        %v1769 = vpack.c.b16 %v1757, %v1756
        %v1770 = vpack.c.b16 %v1759, %v1758
        %v1771 = vpack.c.b16 %v1761, %v1760
        %v1772 = vpack.c.b16 %v1763, %v1762
        %v1773 = vpack.c.b16 %v1765, %v1764
        %v1774 = vpack.c.b16 %v1766, %v1766
        %v1783 = vunpack.c.l.b16 %v1729
        %v1784 = vunpack.c.h.b16 %v1729
        %v1785 = vunpack.c.l.b16 %v1730
        %v1786 = vunpack.c.h.b16 %v1730
        %v1787 = vunpack.c.l.b16 %v1731
        %v1788 = vunpack.c.h.b16 %v1731
        %v1789 = vunpack.c.l.b16 %v1732
        %v1790 = vunpack.c.h.b16 %v1732
        %v1791 = vunpack.c.l.b16 %v1733
        %v1792 = vunpack.c.h.b16 %v1733
        %v1793 = vunpack.c.l.b16 %v1734
        %v1794 = vunpack.c.h.b16 %v1734
        %v1795 = vunpack.c.l.b16 %v1735
        %v1796 = vunpack.c.h.b16 %v1735
        %v1797 = vunpack.c.l.b16 %v1736
        %v1798 = vunpack.c.h.b16 %v1736
        %v1799 = vpack.c.b16 %v1785, %v1783
        %v1800 = vpack.c.b16 %v1786, %v1784
        %v1801 = vpack.c.b16 %v1789, %v1787
        %v1802 = vpack.c.b16 %v1790, %v1788
        %v1803 = vpack.c.b16 %v1793, %v1791
        %v1804 = vpack.c.b16 %v1794, %v1792
        %v1805 = vpack.c.b16 %v1797, %v1795
        %v1806 = vpack.c.b16 %v1798, %v1796
        %v1816 = vsel %vm431, %v1767, 0
        %v1819 = vsel %vm431, %v1768, 0
        %v1822 = vsel %vm431, %v1769, 0
        %v1825 = vsel %vm431, %v1770, 0
        %v1828 = vsel %vm431, %v1771, 0
        %v1831 = vsel %vm431, %v1772, 0
        %v1834 = vsel %vm431, %v1773, 0
        %v1837 = vsel %vm431, %v1774, 0
        %1839 = vmatpush.bf16.msra.mxu0 0
        %1840 = vmatpush.bf16.msra.mxu0 0
        %1841 = vmatpush.bf16.msra.mxu0 0
        %1842 = vmatpush.bf16.msra.mxu0 0
        %1843 = vmatpush.bf16.msra.mxu0 %v1805
        %1844 = vmatpush.bf16.msra.mxu0 %v1803
        %1845 = vmatpush.bf16.msra.mxu0 %v1801
        %1846 = vmatpush.bf16.msra.mxu0 %v1799
        %1847 = vmatmul.bf16.gmra.mxu0 %v1816
        %v1848 = vpop.f32.mrf.mxu0
        %v1849 = vadd.f32 0.0, %v1848
        %v1850 = vpop.f32.mrf.mxu0
        %v1851 = vadd.f32 0.0, %v1850
        %1852 = vmatmul.bf16.gmra.mxu0 %v1819
        %v1853 = vpop.f32.mrf.mxu0
        %v1854 = vadd.f32 0.0, %v1853
        %v1855 = vpop.f32.mrf.mxu0
        %v1856 = vadd.f32 0.0, %v1855
        %1857 = vmatmul.bf16.gmra.mxu0 %v1822
        %v1858 = vpop.f32.mrf.mxu0
        %v1859 = vadd.f32 0.0, %v1858
        %v1860 = vpop.f32.mrf.mxu0
        %v1861 = vadd.f32 0.0, %v1860
        %1862 = vmatmul.bf16.gmra.mxu0 %v1825
        %v1863 = vpop.f32.mrf.mxu0
        %v1864 = vadd.f32 0.0, %v1863
        %v1865 = vpop.f32.mrf.mxu0
        %v1866 = vadd.f32 0.0, %v1865
        %1867 = vmatmul.bf16.gmra.mxu0 %v1828
        %v1868 = vpop.f32.mrf.mxu0
        %v1869 = vadd.f32 0.0, %v1868
        %v1870 = vpop.f32.mrf.mxu0
        %v1871 = vadd.f32 0.0, %v1870
        %1872 = vmatmul.bf16.gmra.mxu0 %v1831
        %v1873 = vpop.f32.mrf.mxu0
        %v1874 = vadd.f32 0.0, %v1873
        %v1875 = vpop.f32.mrf.mxu0
        %v1876 = vadd.f32 0.0, %v1875
        %1877 = vmatmul.bf16.gmra.mxu0 %v1834
        %v1878 = vpop.f32.mrf.mxu0
        %v1879 = vadd.f32 0.0, %v1878
        %v1880 = vpop.f32.mrf.mxu0
        %v1881 = vadd.f32 0.0, %v1880
        %1882 = vmatmul.bf16.gmra.mxu0 %v1837
        %v1883 = vpop.f32.mrf.mxu0
        %v1884 = vadd.f32 0.0, %v1883
        %v1885 = vpop.f32.mrf.mxu0
        %1886 = vdwg.mxu0
        %1887 = vmatpush.bf16.msra.mxu0 0
        %1888 = vmatpush.bf16.msra.mxu0 0
        %1889 = vmatpush.bf16.msra.mxu0 0
        %1890 = vmatpush.bf16.msra.mxu0 0
        %1891 = vmatpush.bf16.msra.mxu0 %v1806
        %1892 = vmatpush.bf16.msra.mxu0 %v1804
        %1893 = vmatpush.bf16.msra.mxu0 %v1802
        %1894 = vmatpush.bf16.msra.mxu0 %v1800
        %1895 = vmatmul.bf16.gmra.mxu0 %v1816
        %v1896 = vpop.f32.mrf.mxu0
        %v1897 = vadd.f32 0.0, %v1896
        %v1898 = vpop.f32.mrf.mxu0
        %v1899 = vadd.f32 0.0, %v1898
        %1900 = vmatmul.bf16.gmra.mxu0 %v1819
        %v1901 = vpop.f32.mrf.mxu0
        %v1902 = vadd.f32 0.0, %v1901
        %v1903 = vpop.f32.mrf.mxu0
        %v1904 = vadd.f32 0.0, %v1903
        %1905 = vmatmul.bf16.gmra.mxu0 %v1822
        %v1906 = vpop.f32.mrf.mxu0
        %v1907 = vadd.f32 0.0, %v1906
        %v1908 = vpop.f32.mrf.mxu0
        %v1909 = vadd.f32 0.0, %v1908
        %1910 = vmatmul.bf16.gmra.mxu0 %v1825
        %v1911 = vpop.f32.mrf.mxu0
        %v1912 = vadd.f32 0.0, %v1911
        %v1913 = vpop.f32.mrf.mxu0
        %v1914 = vadd.f32 0.0, %v1913
        %1915 = vmatmul.bf16.gmra.mxu0 %v1828
        %v1916 = vpop.f32.mrf.mxu0
        %v1917 = vadd.f32 0.0, %v1916
        %v1918 = vpop.f32.mrf.mxu0
        %v1919 = vadd.f32 0.0, %v1918
        %1920 = vmatmul.bf16.gmra.mxu0 %v1831
        %v1921 = vpop.f32.mrf.mxu0
        %v1922 = vadd.f32 0.0, %v1921
        %v1923 = vpop.f32.mrf.mxu0
        %v1924 = vadd.f32 0.0, %v1923
        %1925 = vmatmul.bf16.gmra.mxu0 %v1834
        %v1926 = vpop.f32.mrf.mxu0
        %v1927 = vadd.f32 0.0, %v1926
        %v1928 = vpop.f32.mrf.mxu0
        %v1929 = vadd.f32 0.0, %v1928
        %1930 = vmatmul.bf16.gmra.mxu0 %v1837
        %v1931 = vpop.f32.mrf.mxu0
        %v1932 = vadd.f32 0.0, %v1931
        %v1933 = vpop.f32.mrf.mxu0
        %1934 = vdwg.mxu0
        %v1935 = vadd.f32 %v1683, %v1849
        %v1936 = vadd.f32 %v1684, %v1897
        %v1937 = vadd.f32 %v1685, %v1851
        %v1938 = vadd.f32 %v1686, %v1899
        %v1939 = vadd.f32 %v1687, %v1854
        %v1940 = vadd.f32 %v1688, %v1902
        %v1941 = vadd.f32 %v1689, %v1856
        %v1942 = vadd.f32 %v1690, %v1904
        %v1943 = vadd.f32 %v1691, %v1859
        %v1944 = vadd.f32 %v1692, %v1907
        %v1945 = vadd.f32 %v1693, %v1861
        %v1946 = vadd.f32 %v1694, %v1909
        %v1947 = vadd.f32 %v1695, %v1864
        %v1948 = vadd.f32 %v1696, %v1912
        %v1949 = vadd.f32 %v1697, %v1866
        %v1950 = vadd.f32 %v1698, %v1914
        %v1951 = vadd.f32 %v1699, %v1869
        %v1952 = vadd.f32 %v1700, %v1917
        %v1953 = vadd.f32 %v1701, %v1871
        %v1954 = vadd.f32 %v1702, %v1919
        %v1955 = vadd.f32 %v1703, %v1874
        %v1956 = vadd.f32 %v1704, %v1922
        %v1957 = vadd.f32 %v1705, %v1876
        %v1958 = vadd.f32 %v1706, %v1924
        %v1959 = vadd.f32 %v1707, %v1879
        %v1960 = vadd.f32 %v1708, %v1927
        %v1961 = vadd.f32 %v1709, %v1881
        %v1962 = vadd.f32 %v1710, %v1929
        %v1963 = vadd.f32 %v1711, %v1884
        %v1964 = vadd.f32 %v1712, %v1932
        %v1965 = vld [vmem:[%s243 + $0x10] sm:$0xf]
        %v1966 = vld [vmem:[%s243 + $0x14] sm:$0xf]
        %v1967 = vld [vmem:[%s243 + $0x18] sm:$0xf]
        %v1968 = vld [vmem:[%s243 + $0x1c] sm:$0xf]
        %v1969 = vld [vmem:[%s243 + $0x20] sm:$0xf]
        %v1970 = vld [vmem:[%s243 + $0x24] sm:$0xf]
        %v1971 = vld [vmem:[%s243 + $0x28] sm:$0xf]
        %v1972 = vld [vmem:[%s243 + $0x2c] sm:$0xf]
        %v1973 = vld [vmem:[%s243 + $0x30] sm:$0xf]
        %v1974 = vld [vmem:[%s243 + $0x34] sm:$0xf]
        %v1975 = vld [vmem:[%s243 + $0x38] sm:$0xf]
        %v1976 = vld [vmem:[%s243 + $0x3c] sm:$0xf]
        %v1977 = vld [vmem:[%s243 + $0x40] sm:$0xf]
        %v1978 = vld [vmem:[%s243 + $0x44] sm:$0xf]
        %v1979 = vld [vmem:[%s243 + $0x48] sm:$0xf]
        %v1980 = vld [vmem:[%s243 + $0x4c] sm:$0x1]
        %s1981 = scalar_lea.vmem [#allocation2], 448
        %v1982 = vld [vmem:[%s1981] sm:$0xff]
        %v1983 = vld [vmem:[%s1981 + $0x8] sm:$0xff]
        %v1984 = vld [vmem:[%s1981 + $0x10] sm:$0xff]
        %v1985 = vld [vmem:[%s1981 + $0x18] sm:$0xff]
        %v1986 = vld [vmem:[%s1981 + $0x20] sm:$0xff]
        %v1987 = vld [vmem:[%s1981 + $0x28] sm:$0xff]
        %v1988 = vld [vmem:[%s1981 + $0x30] sm:$0xff]
        %v1989 = vld [vmem:[%s1981 + $0x38] sm:$0xff]
        %v2006 = vunpack.c.l.b16 %v1965
        %v2007 = vunpack.c.l.b16 %v1966
        %v2008 = vunpack.c.l.b16 %v1967
        %v2009 = vunpack.c.l.b16 %v1968
        %v2010 = vunpack.c.l.b16 %v1969
        %v2011 = vunpack.c.l.b16 %v1970
        %v2012 = vunpack.c.l.b16 %v1971
        %v2013 = vunpack.c.l.b16 %v1972
        %v2014 = vunpack.c.l.b16 %v1973
        %v2015 = vunpack.c.l.b16 %v1974
        %v2016 = vunpack.c.l.b16 %v1975
        %v2017 = vunpack.c.l.b16 %v1976
        %v2018 = vunpack.c.l.b16 %v1977
        %v2019 = vunpack.c.l.b16 %v1978
        %v2020 = vunpack.c.l.b16 %v1979
        %v2021 = vunpack.c.l.b16 %v1980
        %v2022 = vpack.c.b16 %v2007, %v2006
        %v2023 = vpack.c.b16 %v2009, %v2008
        %v2024 = vpack.c.b16 %v2011, %v2010
        %v2025 = vpack.c.b16 %v2013, %v2012
        %v2026 = vpack.c.b16 %v2015, %v2014
        %v2027 = vpack.c.b16 %v2017, %v2016
        %v2028 = vpack.c.b16 %v2019, %v2018
        %v2029 = vpack.c.b16 %v2021, %v2020
        %v2031 = vshrl.u32 %v2022, 16
        %v2033 = vshll.u32 %v2022, 16
        %v2035 = vrot.slane %v2033, 1
        %v2036 = vor.u32 %v2031, %v2035
        %v2038 = vshll.u32 %v2023, 16
        %v2040 = vrot.slane %v2038, 1
        %v2041 = vsel %vm327, %v2036, %v2040
        %v2042 = vshrl.u32 %v2023, 16
        %v2044 = vor.u32 %v2042, %v2040
        %v2046 = vshll.u32 %v2024, 16
        %v2048 = vrot.slane %v2046, 1
        %v2049 = vsel %vm327, %v2044, %v2048
        %v2050 = vshrl.u32 %v2024, 16
        %v2052 = vor.u32 %v2050, %v2048
        %v2054 = vshll.u32 %v2025, 16
        %v2056 = vrot.slane %v2054, 1
        %v2057 = vsel %vm327, %v2052, %v2056
        %v2058 = vshrl.u32 %v2025, 16
        %v2060 = vor.u32 %v2058, %v2056
        %v2062 = vshll.u32 %v2026, 16
        %v2064 = vrot.slane %v2062, 1
        %v2065 = vsel %vm327, %v2060, %v2064
        %v2066 = vshrl.u32 %v2026, 16
        %v2068 = vor.u32 %v2066, %v2064
        %v2070 = vshll.u32 %v2027, 16
        %v2072 = vrot.slane %v2070, 1
        %v2073 = vsel %vm327, %v2068, %v2072
        %v2074 = vshrl.u32 %v2027, 16
        %v2076 = vor.u32 %v2074, %v2072
        %v2078 = vshll.u32 %v2028, 16
        %v2080 = vrot.slane %v2078, 1
        %v2081 = vsel %vm327, %v2076, %v2080
        %v2082 = vshrl.u32 %v2028, 16
        %v2084 = vor.u32 %v2082, %v2080
        %v2086 = vshll.u32 %v2029, 16
        %v2088 = vrot.slane %v2086, 1
        %v2089 = vsel %vm327, %v2084, %v2088
        %v2090 = vshrl.u32 %v2029, 16
        %v2092 = vor.u32 %v2090, %v2088
        %v2101 = vunpack.c.l.b16 %v1982
        %v2102 = vunpack.c.h.b16 %v1982
        %v2103 = vunpack.c.l.b16 %v1983
        %v2104 = vunpack.c.h.b16 %v1983
        %v2105 = vunpack.c.l.b16 %v1984
        %v2106 = vunpack.c.h.b16 %v1984
        %v2107 = vunpack.c.l.b16 %v1985
        %v2108 = vunpack.c.h.b16 %v1985
        %v2109 = vunpack.c.l.b16 %v1986
        %v2110 = vunpack.c.h.b16 %v1986
        %v2111 = vunpack.c.l.b16 %v1987
        %v2112 = vunpack.c.h.b16 %v1987
        %v2113 = vunpack.c.l.b16 %v1988
        %v2114 = vunpack.c.h.b16 %v1988
        %v2115 = vunpack.c.l.b16 %v1989
        %v2116 = vunpack.c.h.b16 %v1989
        %v2117 = vpack.c.b16 %v2103, %v2101
        %v2118 = vpack.c.b16 %v2104, %v2102
        %v2119 = vpack.c.b16 %v2107, %v2105
        %v2120 = vpack.c.b16 %v2108, %v2106
        %v2121 = vpack.c.b16 %v2111, %v2109
        %v2122 = vpack.c.b16 %v2112, %v2110
        %v2123 = vpack.c.b16 %v2115, %v2113
        %v2124 = vpack.c.b16 %v2116, %v2114
        %v2134 = vsel %vm431, %v2041, 0
        %v2137 = vsel %vm431, %v2049, 0
        %v2140 = vsel %vm431, %v2057, 0
        %v2143 = vsel %vm431, %v2065, 0
        %v2146 = vsel %vm431, %v2073, 0
        %v2149 = vsel %vm431, %v2081, 0
        %v2152 = vsel %vm431, %v2089, 0
        %v2155 = vsel %vm431, %v2092, 0
        %2157 = vmatpush.bf16.msra.mxu0 0
        %2158 = vmatpush.bf16.msra.mxu0 0
        %2159 = vmatpush.bf16.msra.mxu0 0
        %2160 = vmatpush.bf16.msra.mxu0 0
        %2161 = vmatpush.bf16.msra.mxu0 %v2123
        %2162 = vmatpush.bf16.msra.mxu0 %v2121
        %2163 = vmatpush.bf16.msra.mxu0 %v2119
        %2164 = vmatpush.bf16.msra.mxu0 %v2117
        %2165 = vmatmul.bf16.gmra.mxu0 %v2134
        %v2166 = vpop.f32.mrf.mxu0
        %v2167 = vadd.f32 0.0, %v2166
        %v2168 = vpop.f32.mrf.mxu0
        %v2169 = vadd.f32 0.0, %v2168
        %2170 = vmatmul.bf16.gmra.mxu0 %v2137
        %v2171 = vpop.f32.mrf.mxu0
        %v2172 = vadd.f32 0.0, %v2171
        %v2173 = vpop.f32.mrf.mxu0
        %v2174 = vadd.f32 0.0, %v2173
        %2175 = vmatmul.bf16.gmra.mxu0 %v2140
        %v2176 = vpop.f32.mrf.mxu0
        %v2177 = vadd.f32 0.0, %v2176
        %v2178 = vpop.f32.mrf.mxu0
        %v2179 = vadd.f32 0.0, %v2178
        %2180 = vmatmul.bf16.gmra.mxu0 %v2143
        %v2181 = vpop.f32.mrf.mxu0
        %v2182 = vadd.f32 0.0, %v2181
        %v2183 = vpop.f32.mrf.mxu0
        %v2184 = vadd.f32 0.0, %v2183
        %2185 = vmatmul.bf16.gmra.mxu0 %v2146
        %v2186 = vpop.f32.mrf.mxu0
        %v2187 = vadd.f32 0.0, %v2186
        %v2188 = vpop.f32.mrf.mxu0
        %v2189 = vadd.f32 0.0, %v2188
        %2190 = vmatmul.bf16.gmra.mxu0 %v2149
        %v2191 = vpop.f32.mrf.mxu0
        %v2192 = vadd.f32 0.0, %v2191
        %v2193 = vpop.f32.mrf.mxu0
        %v2194 = vadd.f32 0.0, %v2193
        %2195 = vmatmul.bf16.gmra.mxu0 %v2152
        %v2196 = vpop.f32.mrf.mxu0
        %v2197 = vadd.f32 0.0, %v2196
        %v2198 = vpop.f32.mrf.mxu0
        %v2199 = vadd.f32 0.0, %v2198
        %2200 = vmatmul.bf16.gmra.mxu0 %v2155
        %v2201 = vpop.f32.mrf.mxu0
        %v2202 = vadd.f32 0.0, %v2201
        %v2203 = vpop.f32.mrf.mxu0
        %2204 = vdwg.mxu0
        %2205 = vmatpush.bf16.msra.mxu0 0
        %2206 = vmatpush.bf16.msra.mxu0 0
        %2207 = vmatpush.bf16.msra.mxu0 0
        %2208 = vmatpush.bf16.msra.mxu0 0
        %2209 = vmatpush.bf16.msra.mxu0 %v2124
        %2210 = vmatpush.bf16.msra.mxu0 %v2122
        %2211 = vmatpush.bf16.msra.mxu0 %v2120
        %2212 = vmatpush.bf16.msra.mxu0 %v2118
        %2213 = vmatmul.bf16.gmra.mxu0 %v2134
        %v2214 = vpop.f32.mrf.mxu0
        %v2215 = vadd.f32 0.0, %v2214
        %v2216 = vpop.f32.mrf.mxu0
        %v2217 = vadd.f32 0.0, %v2216
        %2218 = vmatmul.bf16.gmra.mxu0 %v2137
        %v2219 = vpop.f32.mrf.mxu0
        %v2220 = vadd.f32 0.0, %v2219
        %v2221 = vpop.f32.mrf.mxu0
        %v2222 = vadd.f32 0.0, %v2221
        %2223 = vmatmul.bf16.gmra.mxu0 %v2140
        %v2224 = vpop.f32.mrf.mxu0
        %v2225 = vadd.f32 0.0, %v2224
        %v2226 = vpop.f32.mrf.mxu0
        %v2227 = vadd.f32 0.0, %v2226
        %2228 = vmatmul.bf16.gmra.mxu0 %v2143
        %v2229 = vpop.f32.mrf.mxu0
        %v2230 = vadd.f32 0.0, %v2229
        %v2231 = vpop.f32.mrf.mxu0
        %v2232 = vadd.f32 0.0, %v2231
        %2233 = vmatmul.bf16.gmra.mxu0 %v2146
        %v2234 = vpop.f32.mrf.mxu0
        %v2235 = vadd.f32 0.0, %v2234
        %v2236 = vpop.f32.mrf.mxu0
        %v2237 = vadd.f32 0.0, %v2236
        %2238 = vmatmul.bf16.gmra.mxu0 %v2149
        %v2239 = vpop.f32.mrf.mxu0
        %v2240 = vadd.f32 0.0, %v2239
        %v2241 = vpop.f32.mrf.mxu0
        %v2242 = vadd.f32 0.0, %v2241
        %2243 = vmatmul.bf16.gmra.mxu0 %v2152
        %v2244 = vpop.f32.mrf.mxu0
        %v2245 = vadd.f32 0.0, %v2244
        %v2246 = vpop.f32.mrf.mxu0
        %v2247 = vadd.f32 0.0, %v2246
        %2248 = vmatmul.bf16.gmra.mxu0 %v2155
        %v2249 = vpop.f32.mrf.mxu0
        %v2250 = vadd.f32 0.0, %v2249
        %v2251 = vpop.f32.mrf.mxu0
        %2252 = vdwg.mxu0
        %v2253 = vadd.f32 %v1935, %v2167
        %v2254 = vadd.f32 %v1936, %v2215
        %v2255 = vadd.f32 %v1937, %v2169
        %v2256 = vadd.f32 %v1938, %v2217
        %v2257 = vadd.f32 %v1939, %v2172
        %v2258 = vadd.f32 %v1940, %v2220
        %v2259 = vadd.f32 %v1941, %v2174
        %v2260 = vadd.f32 %v1942, %v2222
        %v2261 = vadd.f32 %v1943, %v2177
        %v2262 = vadd.f32 %v1944, %v2225
        %v2263 = vadd.f32 %v1945, %v2179
        %v2264 = vadd.f32 %v1946, %v2227
        %v2265 = vadd.f32 %v1947, %v2182
        %v2266 = vadd.f32 %v1948, %v2230
        %v2267 = vadd.f32 %v1949, %v2184
        %v2268 = vadd.f32 %v1950, %v2232
        %v2269 = vadd.f32 %v1951, %v2187
        %v2270 = vadd.f32 %v1952, %v2235
        %v2271 = vadd.f32 %v1953, %v2189
        %v2272 = vadd.f32 %v1954, %v2237
        %v2273 = vadd.f32 %v1955, %v2192
        %v2274 = vadd.f32 %v1956, %v2240
        %v2275 = vadd.f32 %v1957, %v2194
        %v2276 = vadd.f32 %v1958, %v2242
        %v2277 = vadd.f32 %v1959, %v2197
        %v2278 = vadd.f32 %v1960, %v2245
        %v2279 = vadd.f32 %v1961, %v2199
        %v2280 = vadd.f32 %v1962, %v2247
        %v2281 = vadd.f32 %v1963, %v2202
        %v2282 = vadd.f32 %v1964, %v2250
        %v2283 = vld [vmem:[%s243 + $0x10] sm:$0xe]
        %s2284 = scalar_lea.vmem [#allocation2], 512
        %v2285 = vld [vmem:[%s2284] sm:$0xff]
        %v2286 = vld [vmem:[%s2284 + $0x8] sm:$0xff]
        %v2287 = vld [vmem:[%s2284 + $0x10] sm:$0xff]
        %v2288 = vld [vmem:[%s2284 + $0x18] sm:$0xff]
        %v2289 = vld [vmem:[%s2284 + $0x20] sm:$0xff]
        %v2290 = vld [vmem:[%s2284 + $0x28] sm:$0xff]
        %v2291 = vld [vmem:[%s2284 + $0x30] sm:$0xff]
        %v2292 = vld [vmem:[%s2284 + $0x38] sm:$0xff]
        %v2294 = vunpack.c.l.b16 %v2283
        %v2295 = vpack.c.b16 %v2007, %v2294
        %v2296 = vrot.slane %v2295, 1
        %v2297 = vrot.slane %v2023, 1
        %v2298 = vsel %vm719, %v2296, %v2297
        %v2299 = vrot.slane %v2024, 1
        %v2300 = vsel %vm719, %v2297, %v2299
        %v2301 = vrot.slane %v2025, 1
        %v2302 = vsel %vm719, %v2299, %v2301
        %v2303 = vrot.slane %v2026, 1
        %v2304 = vsel %vm719, %v2301, %v2303
        %v2305 = vrot.slane %v2027, 1
        %v2306 = vsel %vm719, %v2303, %v2305
        %v2307 = vrot.slane %v2028, 1
        %v2308 = vsel %vm719, %v2305, %v2307
        %v2309 = vrot.slane %v2029, 1
        %v2310 = vsel %vm719, %v2307, %v2309
        %v2319 = vunpack.c.l.b16 %v2285
        %v2320 = vunpack.c.h.b16 %v2285
        %v2321 = vunpack.c.l.b16 %v2286
        %v2322 = vunpack.c.h.b16 %v2286
        %v2323 = vunpack.c.l.b16 %v2287
        %v2324 = vunpack.c.h.b16 %v2287
        %v2325 = vunpack.c.l.b16 %v2288
        %v2326 = vunpack.c.h.b16 %v2288
        %v2327 = vunpack.c.l.b16 %v2289
        %v2328 = vunpack.c.h.b16 %v2289
        %v2329 = vunpack.c.l.b16 %v2290
        %v2330 = vunpack.c.h.b16 %v2290
        %v2331 = vunpack.c.l.b16 %v2291
        %v2332 = vunpack.c.h.b16 %v2291
        %v2333 = vunpack.c.l.b16 %v2292
        %v2334 = vunpack.c.h.b16 %v2292
        %v2335 = vpack.c.b16 %v2321, %v2319
        %v2336 = vpack.c.b16 %v2322, %v2320
        %v2337 = vpack.c.b16 %v2325, %v2323
        %v2338 = vpack.c.b16 %v2326, %v2324
        %v2339 = vpack.c.b16 %v2329, %v2327
        %v2340 = vpack.c.b16 %v2330, %v2328
        %v2341 = vpack.c.b16 %v2333, %v2331
        %v2342 = vpack.c.b16 %v2334, %v2332
        %v2352 = vsel %vm431, %v2298, 0
        %v2355 = vsel %vm431, %v2300, 0
        %v2358 = vsel %vm431, %v2302, 0
        %v2361 = vsel %vm431, %v2304, 0
        %v2364 = vsel %vm431, %v2306, 0
        %v2367 = vsel %vm431, %v2308, 0
        %v2370 = vsel %vm431, %v2310, 0
        %v2373 = vsel %vm431, %v2309, 0
        %2375 = vmatpush.bf16.msra.mxu0 0
        %2376 = vmatpush.bf16.msra.mxu0 0
        %2377 = vmatpush.bf16.msra.mxu0 0
        %2378 = vmatpush.bf16.msra.mxu0 0
        %2379 = vmatpush.bf16.msra.mxu0 %v2341
        %2380 = vmatpush.bf16.msra.mxu0 %v2339
        %2381 = vmatpush.bf16.msra.mxu0 %v2337
        %2382 = vmatpush.bf16.msra.mxu0 %v2335
        %2383 = vmatmul.bf16.gmra.mxu0 %v2352
        %v2384 = vpop.f32.mrf.mxu0
        %v2385 = vadd.f32 0.0, %v2384
        %v2386 = vpop.f32.mrf.mxu0
        %v2387 = vadd.f32 0.0, %v2386
        %2388 = vmatmul.bf16.gmra.mxu0 %v2355
        %v2389 = vpop.f32.mrf.mxu0
        %v2390 = vadd.f32 0.0, %v2389
        %v2391 = vpop.f32.mrf.mxu0
        %v2392 = vadd.f32 0.0, %v2391
        %2393 = vmatmul.bf16.gmra.mxu0 %v2358
        %v2394 = vpop.f32.mrf.mxu0
        %v2395 = vadd.f32 0.0, %v2394
        %v2396 = vpop.f32.mrf.mxu0
        %v2397 = vadd.f32 0.0, %v2396
        %2398 = vmatmul.bf16.gmra.mxu0 %v2361
        %v2399 = vpop.f32.mrf.mxu0
        %v2400 = vadd.f32 0.0, %v2399
        %v2401 = vpop.f32.mrf.mxu0
        %v2402 = vadd.f32 0.0, %v2401
        %2403 = vmatmul.bf16.gmra.mxu0 %v2364
        %v2404 = vpop.f32.mrf.mxu0
        %v2405 = vadd.f32 0.0, %v2404
        %v2406 = vpop.f32.mrf.mxu0
        %v2407 = vadd.f32 0.0, %v2406
        %2408 = vmatmul.bf16.gmra.mxu0 %v2367
        %v2409 = vpop.f32.mrf.mxu0
        %v2410 = vadd.f32 0.0, %v2409
        %v2411 = vpop.f32.mrf.mxu0
        %v2412 = vadd.f32 0.0, %v2411
        %2413 = vmatmul.bf16.gmra.mxu0 %v2370
        %v2414 = vpop.f32.mrf.mxu0
        %v2415 = vadd.f32 0.0, %v2414
        %v2416 = vpop.f32.mrf.mxu0
        %v2417 = vadd.f32 0.0, %v2416
        %2418 = vmatmul.bf16.gmra.mxu0 %v2373
        %v2419 = vpop.f32.mrf.mxu0
        %v2420 = vadd.f32 0.0, %v2419
        %v2421 = vpop.f32.mrf.mxu0
        %2422 = vdwg.mxu0
        %2423 = vmatpush.bf16.msra.mxu0 0
        %2424 = vmatpush.bf16.msra.mxu0 0
        %2425 = vmatpush.bf16.msra.mxu0 0
        %2426 = vmatpush.bf16.msra.mxu0 0
        %2427 = vmatpush.bf16.msra.mxu0 %v2342
        %2428 = vmatpush.bf16.msra.mxu0 %v2340
        %2429 = vmatpush.bf16.msra.mxu0 %v2338
        %2430 = vmatpush.bf16.msra.mxu0 %v2336
        %2431 = vmatmul.bf16.gmra.mxu0 %v2352
        %v2432 = vpop.f32.mrf.mxu0
        %v2433 = vadd.f32 0.0, %v2432
        %v2434 = vpop.f32.mrf.mxu0
        %v2435 = vadd.f32 0.0, %v2434
        %2436 = vmatmul.bf16.gmra.mxu0 %v2355
        %v2437 = vpop.f32.mrf.mxu0
        %v2438 = vadd.f32 0.0, %v2437
        %v2439 = vpop.f32.mrf.mxu0
        %v2440 = vadd.f32 0.0, %v2439
        %2441 = vmatmul.bf16.gmra.mxu0 %v2358
        %v2442 = vpop.f32.mrf.mxu0
        %v2443 = vadd.f32 0.0, %v2442
        %v2444 = vpop.f32.mrf.mxu0
        %v2445 = vadd.f32 0.0, %v2444
        %2446 = vmatmul.bf16.gmra.mxu0 %v2361
        %v2447 = vpop.f32.mrf.mxu0
        %v2448 = vadd.f32 0.0, %v2447
        %v2449 = vpop.f32.mrf.mxu0
        %v2450 = vadd.f32 0.0, %v2449
        %2451 = vmatmul.bf16.gmra.mxu0 %v2364
        %v2452 = vpop.f32.mrf.mxu0
        %v2453 = vadd.f32 0.0, %v2452
        %v2454 = vpop.f32.mrf.mxu0
        %v2455 = vadd.f32 0.0, %v2454
        %2456 = vmatmul.bf16.gmra.mxu0 %v2367
        %v2457 = vpop.f32.mrf.mxu0
        %v2458 = vadd.f32 0.0, %v2457
        %v2459 = vpop.f32.mrf.mxu0
        %v2460 = vadd.f32 0.0, %v2459
        %2461 = vmatmul.bf16.gmra.mxu0 %v2370
        %v2462 = vpop.f32.mrf.mxu0
        %v2463 = vadd.f32 0.0, %v2462
        %v2464 = vpop.f32.mrf.mxu0
        %v2465 = vadd.f32 0.0, %v2464
        %2466 = vmatmul.bf16.gmra.mxu0 %v2373
        %v2467 = vpop.f32.mrf.mxu0
        %v2468 = vadd.f32 0.0, %v2467
        %v2469 = vpop.f32.mrf.mxu0
        %2470 = vdwg.mxu0
        %v2471 = vadd.f32 %v2253, %v2385
        %v2472 = vadd.f32 %v2254, %v2433
        %v2473 = vadd.f32 %v2255, %v2387
        %v2474 = vadd.f32 %v2256, %v2435
        %v2475 = vadd.f32 %v2257, %v2390
        %v2476 = vadd.f32 %v2258, %v2438
        %v2477 = vadd.f32 %v2259, %v2392
        %v2478 = vadd.f32 %v2260, %v2440
        %v2479 = vadd.f32 %v2261, %v2395
        %v2480 = vadd.f32 %v2262, %v2443
        %v2481 = vadd.f32 %v2263, %v2397
        %v2482 = vadd.f32 %v2264, %v2445
        %v2483 = vadd.f32 %v2265, %v2400
        %v2484 = vadd.f32 %v2266, %v2448
        %v2485 = vadd.f32 %v2267, %v2402
        %v2486 = vadd.f32 %v2268, %v2450
        %v2487 = vadd.f32 %v2269, %v2405
        %v2488 = vadd.f32 %v2270, %v2453
        %v2489 = vadd.f32 %v2271, %v2407
        %v2490 = vadd.f32 %v2272, %v2455
        %v2491 = vadd.f32 %v2273, %v2410
        %v2492 = vadd.f32 %v2274, %v2458
        %v2493 = vadd.f32 %v2275, %v2412
        %v2494 = vadd.f32 %v2276, %v2460
        %v2495 = vadd.f32 %v2277, %v2415
        %v2496 = vadd.f32 %v2278, %v2463
        %v2497 = vadd.f32 %v2279, %v2417
        %v2498 = vadd.f32 %v2280, %v2465
        %v2499 = vadd.f32 %v2281, %v2420
        %v2500 = vadd.f32 %v2282, %v2468
        %v2501 = vld [vmem:[%s2] sm:$0x3]
        %v2503 = vperm.slane %v2501, 0
        %v2504 = vperm.slane %v2501, 1
        %v2507 = vadd.f32 %v2471, %v2503
        %v2508 = vadd.f32 %v2472, %v2504
        %v2509 = vadd.f32 %v2473, %v2503
        %v2510 = vadd.f32 %v2474, %v2504
        %v2511 = vadd.f32 %v2475, %v2503
        %v2512 = vadd.f32 %v2476, %v2504
        %v2513 = vadd.f32 %v2477, %v2503
        %v2514 = vadd.f32 %v2478, %v2504
        %v2515 = vadd.f32 %v2479, %v2503
        %v2516 = vadd.f32 %v2480, %v2504
        %v2517 = vadd.f32 %v2481, %v2503
        %v2518 = vadd.f32 %v2482, %v2504
        %v2519 = vadd.f32 %v2483, %v2503
        %v2520 = vadd.f32 %v2484, %v2504
        %v2521 = vadd.f32 %v2485, %v2503
        %v2522 = vadd.f32 %v2486, %v2504
        %v2523 = vadd.f32 %v2487, %v2503
        %v2524 = vadd.f32 %v2488, %v2504
        %v2525 = vadd.f32 %v2489, %v2503
        %v2526 = vadd.f32 %v2490, %v2504
        %v2527 = vadd.f32 %v2491, %v2503
        %v2528 = vadd.f32 %v2492, %v2504
        %v2529 = vadd.f32 %v2493, %v2503
        %v2530 = vadd.f32 %v2494, %v2504
        %v2531 = vadd.f32 %v2495, %v2503
        %v2532 = vadd.f32 %v2496, %v2504
        %v2533 = vadd.f32 %v2497, %v2503
        %v2534 = vadd.f32 %v2498, %v2504
        %v2535 = vadd.f32 %v2499, %v2503
        %v2536 = vadd.f32 %v2500, %v2504
        %2537 = vst [vmem:[%s248] sm:$0xff] %v2507
        %2538 = vst [vmem:[%s248 + $0x8] sm:$0xff] %v2508
        %2539 = vst [vmem:[%s248 + $0x10] sm:$0xff] %v2509
        %2540 = vst [vmem:[%s248 + $0x18] sm:$0xff] %v2510
        %2541 = vst [vmem:[%s248 + $0x20] sm:$0xff] %v2511
        %2542 = vst [vmem:[%s248 + $0x28] sm:$0xff] %v2512
        %2543 = vst [vmem:[%s248 + $0x30] sm:$0xff] %v2513
        %2544 = vst [vmem:[%s248 + $0x38] sm:$0xff] %v2514
        %2545 = vst [vmem:[%s248 + $0x40] sm:$0xff] %v2515
        %2546 = vst [vmem:[%s248 + $0x48] sm:$0xff] %v2516
        %2547 = vst [vmem:[%s248 + $0x50] sm:$0xff] %v2517
        %2548 = vst [vmem:[%s248 + $0x58] sm:$0xff] %v2518
        %2549 = vst [vmem:[%s248 + $0x60] sm:$0xff] %v2519
        %2550 = vst [vmem:[%s248 + $0x68] sm:$0xff] %v2520
        %2551 = vst [vmem:[%s248 + $0x70] sm:$0xff] %v2521
        %2552 = vst [vmem:[%s248 + $0x78] sm:$0xff] %v2522
        %2553 = vst [vmem:[%s248 + $0x80] sm:$0xff] %v2523
        %2554 = vst [vmem:[%s248 + $0x88] sm:$0xff] %v2524
        %2555 = vst [vmem:[%s248 + $0x90] sm:$0xff] %v2525
        %2556 = vst [vmem:[%s248 + $0x98] sm:$0xff] %v2526
        %2557 = vst [vmem:[%s248 + $0xa0] sm:$0xff] %v2527
        %2558 = vst [vmem:[%s248 + $0xa8] sm:$0xff] %v2528
        %2559 = vst [vmem:[%s248 + $0xb0] sm:$0xff] %v2529
        %2560 = vst [vmem:[%s248 + $0xb8] sm:$0xff] %v2530
        %2561 = vst [vmem:[%s248 + $0xc0] sm:$0xff] %v2531
        %2562 = vst [vmem:[%s248 + $0xc8] sm:$0xff] %v2532
        %2563 = vst [vmem:[%s248 + $0xd0] sm:$0xff] %v2533
        %2564 = vst [vmem:[%s248 + $0xd8] sm:$0xff] %v2534
        %2565 = vst [vmem:[%s248 + $0xe0] sm:$0xff] %v2535
        %2566 = vst [vmem:[%s248 + $0xe8] sm:$0xff] %v2536
        %2567 = vst [vmem:[%s248 + $0xf0] sm:$0xff] 0.0
        %2568 = vst [vmem:[%s248 + $0xf8] sm:$0xff] 0.0
        %v2569 = vld [vmem:[%s3] sm:$0xff]
        %v2570 = vld [vmem:[%s3 + $0x8] sm:$0xff]
        %v2571 = vld [vmem:[%s3 + $0x10] sm:$0xff]
        %v2572 = vld [vmem:[%s3 + $0x18] sm:$0xff]
        %v2573 = vld [vmem:[%s3 + $0x20] sm:$0xff]
        %v2574 = vld [vmem:[%s3 + $0x28] sm:$0xff]
        %v2575 = vld [vmem:[%s3 + $0x30] sm:$0xff]
        %v2576 = vld [vmem:[%s3 + $0x38] sm:$0xff]
        %v2577 = vld [vmem:[%s3 + $0x40] sm:$0xff]
        %v2578 = vld [vmem:[%s3 + $0x48] sm:$0xff]
        %v2579 = vld [vmem:[%s3 + $0x50] sm:$0xff]
        %v2580 = vld [vmem:[%s3 + $0x58] sm:$0xff]
        %v2581 = vld [vmem:[%s3 + $0x60] sm:$0xff]
        %v2582 = vld [vmem:[%s3 + $0x68] sm:$0xff]
        %v2583 = vld [vmem:[%s3 + $0x70] sm:$0xff]
        %2585 = vset.pattern.permute.xlu0 0
        %2586 = vperm.xlu0 %2585, %v2569
        %v2587 = vpop.permute.xlu0 %2586
        %2590 = vset.pattern.permute.xlu0 0
        %2591 = vperm.xlu0 %2590, %v2570
        %v2592 = vpop.permute.xlu0 %2591
        %2595 = vset.pattern.permute.xlu0 0
        %2596 = vperm.xlu0 %2595, %v2571
        %v2597 = vpop.permute.xlu0 %2596
        %2600 = vset.pattern.permute.xlu0 0
        %2601 = vperm.xlu0 %2600, %v2572
        %v2602 = vpop.permute.xlu0 %2601
        %2605 = vset.pattern.permute.xlu0 0
        %2606 = vperm.xlu0 %2605, %v2573
        %v2607 = vpop.permute.xlu0 %2606
        %2610 = vset.pattern.permute.xlu0 0
        %2611 = vperm.xlu0 %2610, %v2574
        %v2612 = vpop.permute.xlu0 %2611
        %2615 = vset.pattern.permute.xlu0 0
        %2616 = vperm.xlu0 %2615, %v2575
        %v2617 = vpop.permute.xlu0 %2616
        %2620 = vset.pattern.permute.xlu0 0
        %2621 = vperm.xlu0 %2620, %v2576
        %v2622 = vpop.permute.xlu0 %2621
        %2625 = vset.pattern.permute.xlu0 0
        %2626 = vperm.xlu0 %2625, %v2577
        %v2627 = vpop.permute.xlu0 %2626
        %2630 = vset.pattern.permute.xlu0 0
        %2631 = vperm.xlu0 %2630, %v2578
        %v2632 = vpop.permute.xlu0 %2631
        %2635 = vset.pattern.permute.xlu0 0
        %2636 = vperm.xlu0 %2635, %v2579
        %v2637 = vpop.permute.xlu0 %2636
        %2640 = vset.pattern.permute.xlu0 0
        %2641 = vperm.xlu0 %2640, %v2580
        %v2642 = vpop.permute.xlu0 %2641
        %2645 = vset.pattern.permute.xlu0 0
        %2646 = vperm.xlu0 %2645, %v2581
        %v2647 = vpop.permute.xlu0 %2646
        %2650 = vset.pattern.permute.xlu0 0
        %2651 = vperm.xlu0 %2650, %v2582
        %v2652 = vpop.permute.xlu0 %2651
        %2655 = vset.pattern.permute.xlu0 0
        %2656 = vperm.xlu0 %2655, %v2583
        %v2657 = vpop.permute.xlu0 %2656
        %v2659 = vmul.f32 %v2507, %v2587
        %v2660 = vmul.f32 %v2509, %v2592
        %v2661 = vmul.f32 %v2511, %v2597
        %v2662 = vmul.f32 %v2513, %v2602
        %v2663 = vmul.f32 %v2515, %v2607
        %v2664 = vmul.f32 %v2517, %v2612
        %v2665 = vmul.f32 %v2519, %v2617
        %v2666 = vmul.f32 %v2521, %v2622
        %v2667 = vmul.f32 %v2523, %v2627
        %v2668 = vmul.f32 %v2525, %v2632
        %v2669 = vmul.f32 %v2527, %v2637
        %v2670 = vmul.f32 %v2529, %v2642
        %v2671 = vmul.f32 %v2531, %v2647
        %v2672 = vmul.f32 %v2533, %v2652
        %v2673 = vmul.f32 %v2535, %v2657
        %v2674 = vadd.f32 %v2659, %v2660
        %v2675 = vadd.f32 %v2674, %v2661
        %v2676 = vadd.f32 %v2675, %v2662
        %v2677 = vadd.f32 %v2676, %v2663
        %v2678 = vadd.f32 %v2677, %v2664
        %v2679 = vadd.f32 %v2678, %v2665
        %v2680 = vadd.f32 %v2679, %v2666
        %v2681 = vadd.f32 %v2680, %v2667
        %v2682 = vadd.f32 %v2681, %v2668
        %v2683 = vadd.f32 %v2682, %v2669
        %v2684 = vadd.f32 %v2683, %v2670
        %v2685 = vadd.f32 %v2684, %v2671
        %v2686 = vadd.f32 %v2685, %v2672
        %v2687 = vadd.f32 %v2686, %v2673
        %v2688 = vrot.slane %v2687, 4
        %v2689 = vadd.f32 %v2687, %v2688
        %v2690 = vrot.slane %v2689, 2
        %v2691 = vadd.f32 %v2689, %v2690
        %v2692 = vrot.slane %v2691, 1
        %v2693 = vadd.f32 %v2691, %v2692
        %2694 = vst [vmem:[%s252] sm:$0x1] %v2693
        %v2695 = vmul.f32 %v2659, %v2659
        %v2696 = vmul.f32 %v2660, %v2660
        %v2697 = vmul.f32 %v2661, %v2661
        %v2698 = vmul.f32 %v2662, %v2662
        %v2699 = vmul.f32 %v2663, %v2663
        %v2700 = vmul.f32 %v2664, %v2664
        %v2701 = vmul.f32 %v2665, %v2665
        %v2702 = vmul.f32 %v2666, %v2666
        %v2703 = vmul.f32 %v2667, %v2667
        %v2704 = vmul.f32 %v2668, %v2668
        %v2705 = vmul.f32 %v2669, %v2669
        %v2706 = vmul.f32 %v2670, %v2670
        %v2707 = vmul.f32 %v2671, %v2671
        %v2708 = vmul.f32 %v2672, %v2672
        %v2709 = vmul.f32 %v2673, %v2673
        %v2710 = vadd.f32 %v2695, %v2696
        %v2711 = vadd.f32 %v2710, %v2697
        %v2712 = vadd.f32 %v2711, %v2698
        %v2713 = vadd.f32 %v2712, %v2699
        %v2714 = vadd.f32 %v2713, %v2700
        %v2715 = vadd.f32 %v2714, %v2701
        %v2716 = vadd.f32 %v2715, %v2702
        %v2717 = vadd.f32 %v2716, %v2703
        %v2718 = vadd.f32 %v2717, %v2704
        %v2719 = vadd.f32 %v2718, %v2705
        %v2720 = vadd.f32 %v2719, %v2706
        %v2721 = vadd.f32 %v2720, %v2707
        %v2722 = vadd.f32 %v2721, %v2708
        %v2723 = vadd.f32 %v2722, %v2709
        %v2724 = vrot.slane %v2723, 4
        %v2725 = vadd.f32 %v2723, %v2724
        %v2726 = vrot.slane %v2725, 2
        %v2727 = vadd.f32 %v2725, %v2726
        %v2728 = vrot.slane %v2727, 1
        %v2729 = vadd.f32 %v2727, %v2728
        %2730 = vst [vmem:[%s252 + $0x1] sm:$0x1] %v2729
        %p2731 = scmp.lt.s32.totalorder %s18, 1
        %s2732 = scalar_select %p2731, %s18, 1
        %s2733 = smul.addr %s2732, 32
        %s2734 = smul.addr %s2733, 8
        %s2735 = scalar_lea.vmem %s4, %s2734
        %p2736 = scmp.lt.s32.totalorder %s18, 1
        %s2737 = scalar_select %p2736, %s18, 1
        %s2738 = smul.addr %s2737, 2
        %s2739 = scalar_lea.vmem %s5, %s2738
        // Predicated region
        $region41: #{resblock_forward.2} parent=35 // pred_check
          %p2740 = pneg %p125
        $region42: #{resblock_forward.2} parent=35 // pred_check_branch
          %2742 = sbr.rel (%p2740) target = $region44
        $region43: #{resblock_forward.2} parent=35 // pred_region
          _
        $region44: #{resblock_forward.2} parent=35 // pred_fallthru
          _
        // Predicated region
        $region45: #{resblock_forward.2} parent=35 // pred_check
          %p2743 = pneg %p151
        $region46: #{resblock_forward.2} parent=35 // pred_check_branch
          %2745 = sbr.rel (%p2743) target = $region48
        $region47: #{resblock_forward.2} parent=35 // pred_region
          _
        $region48: #{resblock_forward.2} parent=35 // pred_fallthru
          _
      $region36: #{resblock_forward.2} parent=5 // pred_fallthru
        _
      %p2746 = scmp.le.s32.totalorder 2, %s13
      // Predicated region
      $region49: #{resblock_forward.2} parent=5 // pred_check
        %p2747 = pneg %p2746
      $region50: #{resblock_forward.2} parent=5 // pred_check_branch
        %2749 = sbr.rel (%p2747) target = $region52
      $region51: #{resblock_forward.2} parent=5 // pred_region
        %s2750 = ssub.s32 %s13, 2
        // Predicated region
        $region53: #{resblock_forward.2} parent=51 // pred_check
          %p2751 = pneg %p131
        $region54: #{resblock_forward.2} parent=51 // pred_check_branch
          %2753 = sbr.rel (%p2751) target = $region56
        $region55: #{resblock_forward.2} parent=51 // pred_region
          %p2754 = scmp.lt.s32.totalorder %s19, 1
          %s2755 = scalar_select %p2754, %s19, 1
          %s2756 = smul.addr %s2755, 32
          %s2757 = smul.addr %s2756, 8
          %s2758 = scalar_lea.vmem %s4, %s2757
        $region56: #{resblock_forward.2} parent=51 // pred_fallthru
          _
        // Predicated region
        $region57: #{resblock_forward.2} parent=51 // pred_check
          %p2759 = pneg %p157
        $region58: #{resblock_forward.2} parent=51 // pred_check_branch
          %2761 = sbr.rel (%p2759) target = $region60
        $region59: #{resblock_forward.2} parent=51 // pred_region
          %p2762 = scmp.lt.s32.totalorder %s19, 1
          %s2763 = scalar_select %p2762, %s19, 1
          %s2764 = smul.addr %s2763, 2
          %s2765 = scalar_lea.vmem %s5, %s2764
        $region60: #{resblock_forward.2} parent=51 // pred_fallthru
          _
      $region52: #{resblock_forward.2} parent=5 // pred_fallthru
        _
    $region6: #{resblock_forward.2} parent=1 // loop_footer
      %s17 = sadd.s32 1, %s13
    $region7: #{resblock_forward.2} parent=1 // loop_footer_branch
      %12 = sbr.rel target = $region3
    $region8: #{resblock_forward.2} parent=1 // loop_exit
      _
    %2766 = vsyncpa [#allocation3], 1
    %s2767 = scalar_lea.sflag [#allocation3], 1
    %2768 = vsyncpa %s2767, 1

</llo_original>
